<compile_context>
chip_gen: v5e
topology: v5e:2x2
jax: 0.10.0
libtpu: 0.0.40
codegen_flags: <defaults>
</compile_context>

<pallas_src>
import math
from functools import partial

import jax
import jax.numpy as jnp
from jax.experimental import pallas as pl
from jax.experimental.pallas import tpu as pltpu

# Large negative used as an additive mask bias.  finfo.min/2 keeps score + bias
# finite (no -inf/NaN through the max-subtract), while exp() of masked entries
# still underflows to exactly 0 -> identical softmax weights to the reference's
# masked_fill(torch.finfo(float32).min).
_MASK_NEG = float(jnp.finfo(jnp.float32).min) / 2


def _mha_kernel(*args, n_heads, dim_per_head, tq, shared_qkv):
    if shared_qkv:
        (x_ref, mask_ref,
         wqT_ref, bq_ref, wkT_ref, bk_ref, wvT_ref, bv_ref, woT_ref, bo_ref,
         out_ref, kT_sc, v_sc) = args
        q_in_ref = k_in_ref = v_in_ref = x_ref
    else:
        (q_in_ref, k_in_ref, v_in_ref, mask_ref,
         wqT_ref, bq_ref, wkT_ref, bk_ref, wvT_ref, bv_ref, woT_ref, bo_ref,
         out_ref, kT_sc, v_sc) = args

    b_blk, _, dim = out_ref.shape
    k_len = v_sc.shape[1]
    qi = pl.program_id(1)

    # ---- K / V projections: once per batch block, reused across query tiles ----
    @pl.when(qi == 0)
    def _project_kv():
        xk = k_in_ref[...].reshape(b_blk * k_len, dim)                 # bf16
        k = jnp.dot(xk, wkT_ref[...],
                    preferred_element_type=jnp.float32) + bk_ref[...]
        if shared_qkv:
            xv = xk
        else:
            xv = v_in_ref[...].reshape(b_blk * k_len, dim)
        v = jnp.dot(xv, wvT_ref[...],
                    preferred_element_type=jnp.float32) + bv_ref[...]
        # Store K transposed (dph-major) once per batch block, so the per-head
        # score matmul is a plain (tq, dph) @ (dph, k_len) dot with no transpose
        # in the head loop.
        kT_sc[...] = jnp.swapaxes(k.reshape(b_blk, k_len, dim), 1, 2).astype(jnp.bfloat16)
        v_sc[...] = v.reshape(b_blk, k_len, dim).astype(jnp.bfloat16)

    # ---- Q projection for this query tile (1/sqrt(dph) folded into Wq/bq) ----
    if shared_qkv:
        q_start = pl.multiple_of(qi * tq, tq)
        xq = q_in_ref[:, pl.ds(q_start, tq), :]
    else:
        xq = q_in_ref[...]
    xq = xq.reshape(b_blk * tq, dim)                                   # bf16
    q = jnp.dot(xq, wqT_ref[...],
                preferred_element_type=jnp.float32) + bq_ref[...]
    q3 = q.reshape(b_blk, tq, dim)

    # Additive mask, computed once per grid step (not per head).
    mask_add = jnp.where(mask_ref[...] == 0.0,
                         jnp.float32(_MASK_NEG), jnp.float32(0.0))     # (b,1,k)

    # ---- per-head attention + accumulated output projection ----
    acc = jnp.broadcast_to(bo_ref[...], (b_blk * tq, dim)).astype(jnp.float32)
    for h in range(n_heads):
        lo = h * dim_per_head
        hi = lo + dim_per_head
        qh = q3[:, :, lo:hi].astype(jnp.bfloat16)     # (b, tq, dph)
        khT = kT_sc[:, lo:hi, :]                      # (b, dph, k) bf16, static ref slice
        vh = v_sc[:, :, lo:hi]                        # (b, k, dph) bf16, static ref slice

        scores = jnp.einsum("bqd,bdk->bqk", qh, khT,
                            preferred_element_type=jnp.float32)        # (b, tq, k)
        scores = scores + mask_add
        m = jnp.max(scores, axis=-1, keepdims=True)
        e = jnp.exp(scores - m)
        w = e * pl.reciprocal(jnp.sum(e, axis=-1, keepdims=True))

        ctx = jnp.einsum("bqk,bkd->bqd", w.astype(jnp.bfloat16), vh,
                         preferred_element_type=jnp.float32)           # (b, tq, dph)
        acc = acc + jnp.dot(
            ctx.reshape(b_blk * tq, dim_per_head).astype(jnp.bfloat16),
            woT_ref[lo:hi, :],
            preferred_element_type=jnp.float32)

    # TODO(synk): optional head_mask multiply and output_attention return are not
    # implemented (reference defaults: head_mask=None, output_attention=False).
    out_ref[...] = acc.reshape(b_blk, tq, dim)


def _vmem_capacity_bytes():
    try:
        return int(pltpu.get_tpu_info().vmem_capacity_bytes)
    except Exception:
        return 64 * 1024 * 1024   # conservative fallback: v7x per-TensorCore VMEM


def _pick_q_block(q_len, requested=None):
    if requested is not None:
        assert q_len % requested == 0, "q_block must divide q_len"
        return requested
    if q_len <= 256:
        return q_len
    for cand in (256, 128, 64):
        if q_len % cand == 0:
            return cand
    return q_len


def _pick_batch_block(bs, tq, k_len, dim, shared_qkv, vmem_bytes, requested=None):
    if requested is not None:
        assert bs % requested == 0, "batch_block must divide bs"
        return requested
    # Rough per-batch-row VMEM bytes for the chosen tiles: bf16 input blocks
    # (double-buffered), f32 output block (double-buffered), bf16 K^T/V scratch,
    # plus the dominant in-kernel live values (projections + per-head scores).
    in_bytes = k_len * dim * 2 * (2 if shared_qkv else 4)
    if not shared_qkv:
        in_bytes += tq * dim * 2 * 2
    out_bytes = tq * dim * 4 * 2
    scratch_bytes = 2 * k_len * dim * 2
    live_bytes = tq * dim * 4 + 2 * tq * k_len * 4 + k_len * dim * 4
    per_row = in_bytes + out_bytes + scratch_bytes + live_bytes
    budget = vmem_bytes // 2          # headroom for resident weights, spills, etc.
    b_blk = 1
    for cand in (8, 4, 2):
        if bs % cand == 0 and bs // cand >= 2 and cand * per_row <= budget:
            b_blk = cand
            break
    return b_blk


def tt_multihead_self_attention(query, key, value, mask, params, n_heads,
                                batch_block=None, q_block=None):
    """query/key/value: (1, bs, seq, dim) f32; mask: (bs, k_len), 1=attend, 0=masked."""
    _, bs, q_len, dim = query.shape
    k_len = key.shape[-2]
    assert dim % n_heads == 0
    dph = dim // n_heads
    shared_qkv = (query is key) and (query is value)
    if shared_qkv:
        assert q_len == k_len

    tq = _pick_q_block(q_len, q_block)
    vmem_bytes = _vmem_capacity_bytes()
    b_blk = _pick_batch_block(bs, tq, k_len, dim, shared_qkv, vmem_bytes, batch_block)
    n_b = bs // b_blk
    n_q = q_len // tq

    f32, bf16 = jnp.float32, jnp.bfloat16
    scale = 1.0 / math.sqrt(dph)

    # Pre-transpose nn.Linear weights (out,in) -> (in,out), fold the query scale
    # into Wq/bq, and cast matmul operands to bf16 (MXU-native). Biases stay f32.
    wqT = (params["q_lin.weight"].astype(f32) * scale).T.astype(bf16)
    bq = (params["q_lin.bias"].astype(f32) * scale).reshape(1, dim)
    wkT = params["k_lin.weight"].astype(f32).T.astype(bf16)
    bk = params["k_lin.bias"].astype(f32).reshape(1, dim)
    wvT = params["v_lin.weight"].astype(f32).T.astype(bf16)
    bv = params["v_lin.bias"].astype(f32).reshape(1, dim)
    woT = params["out_lin.weight"].astype(f32).T.astype(bf16)
    bo = params["out_lin.bias"].astype(f32).reshape(1, dim)

    mask3 = mask.reshape(bs, 1, k_len).astype(f32)

    kernel = partial(_mha_kernel, n_heads=n_heads, dim_per_head=dph, tq=tq,
                     shared_qkv=shared_qkv)

    const2 = lambda b, qi: (0, 0)
    w_spec = pl.BlockSpec((dim, dim), const2)                 # VMEM-resident weights
    b_spec = pl.BlockSpec((1, dim), const2)
    mask_spec = pl.BlockSpec((b_blk, 1, k_len), lambda b, qi: (b, 0, 0))
    kv_spec = pl.BlockSpec((b_blk, k_len, dim), lambda b, qi: (b, 0, 0))

    if shared_qkv:
        x = query.reshape(bs, q_len, dim).astype(bf16)
        operands = (x, mask3, wqT, bq, wkT, bk, wvT, bv, woT, bo)
        in_specs = [kv_spec, mask_spec,
                    w_spec, b_spec, w_spec, b_spec, w_spec, b_spec, w_spec, b_spec]
    else:
        xq = query.reshape(bs, q_len, dim).astype(bf16)
        xk = key.reshape(bs, k_len, dim).astype(bf16)
        xv = value.reshape(bs, k_len, dim).astype(bf16)
        q_spec = pl.BlockSpec((b_blk, tq, dim), lambda b, qi: (b, qi, 0))
        operands = (xq, xk, xv, mask3, wqT, bq, wkT, bk, wvT, bv, woT, bo)
        in_specs = [q_spec, kv_spec, kv_spec, mask_spec,
                    w_spec, b_spec, w_spec, b_spec, w_spec, b_spec, w_spec, b_spec]

    out = pl.pallas_call(
        kernel,
        out_shape=jax.ShapeDtypeStruct((bs, q_len, dim), f32),
        grid_spec=pltpu.PrefetchScalarGridSpec(
            num_scalar_prefetch=0,
            grid=(n_b, n_q),
            in_specs=in_specs,
            out_specs=pl.BlockSpec((b_blk, tq, dim), lambda b, qi: (b, qi, 0)),
            scratch_shapes=[
                pltpu.VMEM((b_blk, dim, k_len), bf16),   # K^T (dph-major) per batch block
                pltpu.VMEM((b_blk, k_len, dim), bf16),   # V per batch block
            ],
        ),
        compiler_params=pltpu.CompilerParams(
            dimension_semantics=("parallel", "arbitrary"),
            vmem_limit_bytes=int(vmem_bytes * 7 // 8),
        ),
    )(*operands)

    return out.reshape(1, bs, q_len, dim)


def _reference(query, key, value, mask, params, n_heads):
    """Plain-JAX f32 reference matching the PyTorch module semantics."""
    _, bs, q_len, dim = query.shape
    k_len = key.shape[-2]
    dph = dim // n_heads

    def lin(x, w, b):
        return jnp.einsum("bsd,od->bso", x, w) + b

    xq = query.reshape(bs, q_len, dim)
    xk = key.reshape(bs, k_len, dim)
    xv = value.reshape(bs, k_len, dim)

    def shape(x):
        return x.reshape(bs, -1, n_heads, dph).transpose(0, 2, 1, 3)

    q = shape(lin(xq, params["q_lin.weight"], params["q_lin.bias"]))
    k = shape(lin(xk, params["k_lin.weight"], params["k_lin.bias"]))
    v = shape(lin(xv, params["v_lin.weight"], params["v_lin.bias"]))

    q = q / math.sqrt(dph)
    scores = jnp.einsum("bhqd,bhkd->bhqk", q, k)
    m = (mask == 0).reshape(bs, 1, 1, k_len)
    scores = jnp.where(m, jnp.finfo(jnp.float32).min, scores)
    weights = jax.nn.softmax(scores, axis=-1)
    context = jnp.einsum("bhqk,bhkd->bhqd", weights, v)
    context = context.transpose(0, 2, 1, 3).reshape(bs, q_len, dim)
    out = lin(context, params["out_lin.weight"], params["out_lin.bias"])
    return out.reshape(1, bs, q_len, dim)


def _make_params(key0, dim):
    ks = jax.random.split(key0, 8)
    scale = 1.0 / math.sqrt(dim)
    return {
        "q_lin.weight": jax.random.normal(ks[0], (dim, dim), jnp.float32) * scale,
        "q_lin.bias":   jax.random.normal(ks[1], (dim,), jnp.float32) * 0.1,
        "k_lin.weight": jax.random.normal(ks[2], (dim, dim), jnp.float32) * scale,
        "k_lin.bias":   jax.random.normal(ks[3], (dim,), jnp.float32) * 0.1,
        "v_lin.weight": jax.random.normal(ks[4], (dim, dim), jnp.float32) * scale,
        "v_lin.bias":   jax.random.normal(ks[5], (dim,), jnp.float32) * 0.1,
        "out_lin.weight": jax.random.normal(ks[6], (dim, dim), jnp.float32) * scale,
        "out_lin.bias":   jax.random.normal(ks[7], (dim,), jnp.float32) * 0.1,
    }


if __name__ == "__main__":
    # Small config consistent with the module: dim=32, n_heads=4 (dph=8),
    # bs=2, seq=8.  (Real DistilBERT: dim=768, n_heads=12, seq=512.)
    bs, seq, dim, n_heads = 2, 8, 32, 4

    key0 = jax.random.PRNGKey(0)
    kp, kh, kb, kq, kk, kv = jax.random.split(key0, 6)
    params = _make_params(kp, dim)

    # bf16 MXU operands vs. f32 reference -> tolerance loosened accordingly.
    rtol, atol = 3e-2, 3e-2

    # --- self-attention path (query is key is value): single deduplicated input ---
    hidden = jax.random.normal(kh, (1, bs, seq, dim), jnp.float32)
    mask = jnp.ones((bs, seq), jnp.float32)
    mask = mask.at[0, -2:].set(0.0)
    mask = mask.at[1, -1:].set(0.0)

    out = tt_multihead_self_attention(hidden, hidden, hidden, mask, params, n_heads)
    out = jax.block_until_ready(out)
    ref = _reference(hidden, hidden, hidden, mask, params, n_heads)
    assert out.shape == (1, bs, seq, dim)
    assert jnp.allclose(out, ref, rtol=rtol, atol=atol), "self-attention mismatch"

    # --- batch-block packing path (bs=8, b_blk=4 -> grid=(2, 1)) ---
    bs2 = 8
    hidden2 = jax.random.normal(kb, (1, bs2, seq, dim), jnp.float32)
    mask2 = jnp.ones((bs2, seq), jnp.float32).at[:, -1:].set(0.0)
    out2 = tt_multihead_self_attention(hidden2, hidden2, hidden2, mask2, params,
                                       n_heads, batch_block=4)
    out2 = jax.block_until_ready(out2)
    ref2 = _reference(hidden2, hidden2, hidden2, mask2, params, n_heads)
    assert jnp.allclose(out2, ref2, rtol=rtol, atol=atol), "batched-block mismatch"

    # --- distinct q/k/v path (cross-attention style, q_len != k_len) ---
    q_len3, k_len3 = 8, 16
    qx = jax.random.normal(kq, (1, bs, q_len3, dim), jnp.float32)
    kx = jax.random.normal(kk, (1, bs, k_len3, dim), jnp.float32)
    vx = jax.random.normal(kv, (1, bs, k_len3, dim), jnp.float32)
    maskx = jnp.ones((bs, k_len3), jnp.float32).at[:, -3:].set(0.0)
    out3 = tt_multihead_self_attention(qx, kx, vx, maskx, params, n_heads)
    out3 = jax.block_until_ready(out3)
    ref3 = _reference(qx, kx, vx, maskx, params, n_heads)
    assert jnp.allclose(out3, ref3, rtol=rtol, atol=atol), "cross-attention mismatch"

    print("KERNEL_OK")
</pallas_src>

<mosaic_0001>
module attributes {stable_mosaic.version = 11 : i64} {
  func.func @_mha_kernel(%arg0: i32, %arg1: i32, %arg2: memref<1x8x32xbf16, #tpu.memory_space<vmem>>, %arg3: memref<1x1x8xf32, #tpu.memory_space<vmem>>, %arg4: memref<32x32xbf16, #tpu.memory_space<vmem>>, %arg5: memref<1x32xf32, #tpu.memory_space<vmem>>, %arg6: memref<32x32xbf16, #tpu.memory_space<vmem>>, %arg7: memref<1x32xf32, #tpu.memory_space<vmem>>, %arg8: memref<32x32xbf16, #tpu.memory_space<vmem>>, %arg9: memref<1x32xf32, #tpu.memory_space<vmem>>, %arg10: memref<32x32xbf16, #tpu.memory_space<vmem>>, %arg11: memref<1x32xf32, #tpu.memory_space<vmem>>, %arg12: memref<1x8x32xf32, #tpu.memory_space<vmem>>, %arg13: memref<1x32x8xbf16, #tpu.memory_space<vmem>>, %arg14: memref<1x8x32xbf16, #tpu.memory_space<vmem>>) attributes {dimension_semantics = [#tpu.dimension_semantics<parallel>, #tpu.dimension_semantics<arbitrary>], iteration_bounds = array<i64: 2, 1>, scalar_prefetch = 0 : i64, scratch_operands = 2 : i64, tpu.core_type = #tpu.core_type<tc>, window_params = [{transform_indices = @transform_0, window_bounds = array<i64: 1, 8, 32>}, {transform_indices = @transform_1, window_bounds = array<i64: 1, 1, 8>}, {pipeline_mode = #tpu.pipeline_mode<synchronous>, transform_indices = @transform_2, window_bounds = array<i64: 32, 32>}, {pipeline_mode = #tpu.pipeline_mode<synchronous>, transform_indices = @transform_3, window_bounds = array<i64: 1, 32>}, {pipeline_mode = #tpu.pipeline_mode<synchronous>, transform_indices = @transform_4, window_bounds = array<i64: 32, 32>}, {pipeline_mode = #tpu.pipeline_mode<synchronous>, transform_indices = @transform_5, window_bounds = array<i64: 1, 32>}, {pipeline_mode = #tpu.pipeline_mode<synchronous>, transform_indices = @transform_6, window_bounds = array<i64: 32, 32>}, {pipeline_mode = #tpu.pipeline_mode<synchronous>, transform_indices = @transform_7, window_bounds = array<i64: 1, 32>}, {pipeline_mode = #tpu.pipeline_mode<synchronous>, transform_indices = @transform_8, window_bounds = array<i64: 32, 32>}, {pipeline_mode = #tpu.pipeline_mode<synchronous>, transform_indices = @transform_9, window_bounds = array<i64: 1, 32>}, {transform_indices = @transform_10, window_bounds = array<i64: 1, 8, 32>}]} {
    %c0_i32 = arith.constant 0 : i32
    %0 = arith.cmpi eq, %arg1, %c0_i32 : i32
    %1 = arith.extui %0 : i1 to i32
    %c0_i32_0 = arith.constant 0 : i32
    %2 = arith.cmpi ne, %1, %c0_i32_0 : i32
    scf.if %2 {
      %c0_66 = arith.constant 0 : index
      %c0_67 = arith.constant 0 : index
      %c0_68 = arith.constant 0 : index
      %121 = vector.load %arg2[%c0_66, %c0_67, %c0_68] : memref<1x8x32xbf16, #tpu.memory_space<vmem>>, vector<1x8x32xbf16>
      %122 = vector.shape_cast %121 : vector<1x8x32xbf16> to vector<8x32xbf16>
      %c0_69 = arith.constant 0 : index
      %c0_70 = arith.constant 0 : index
      %123 = vector.load %arg6[%c0_69, %c0_70] : memref<32x32xbf16, #tpu.memory_space<vmem>>, vector<32x32xbf16>
      %cst_71 = arith.constant dense<0.000000e+00> : vector<8x32xf32>
      %124 = tpu.matmul %122, %123, %cst_71 {dimension_numbers = #tpu.dot_dimension_numbers<[1], [0], [0], [1], [0, 0, 1, 1], [], []>} : vector<8x32xbf16>, vector<32x32xbf16>, vector<8x32xf32> -> vector<8x32xf32>
      %c0_72 = arith.constant 0 : index
      %c0_73 = arith.constant 0 : index
      %125 = vector.load %arg7[%c0_72, %c0_73] : memref<1x32xf32, #tpu.memory_space<vmem>>, vector<1x32xf32>
      %126 = vector.broadcast %125 : vector<1x32xf32> to vector<8x32xf32>
      %127 = arith.addf %124, %126 : vector<8x32xf32>
      %c0_74 = arith.constant 0 : index
      %c0_75 = arith.constant 0 : index
      %128 = vector.load %arg8[%c0_74, %c0_75] : memref<32x32xbf16, #tpu.memory_space<vmem>>, vector<32x32xbf16>
      %cst_76 = arith.constant dense<0.000000e+00> : vector<8x32xf32>
      %129 = tpu.matmul %122, %128, %cst_76 {dimension_numbers = #tpu.dot_dimension_numbers<[1], [0], [0], [1], [0, 0, 1, 1], [], []>} : vector<8x32xbf16>, vector<32x32xbf16>, vector<8x32xf32> -> vector<8x32xf32>
      %c0_77 = arith.constant 0 : index
      %c0_78 = arith.constant 0 : index
      %130 = vector.load %arg9[%c0_77, %c0_78] : memref<1x32xf32, #tpu.memory_space<vmem>>, vector<1x32xf32>
      %131 = vector.broadcast %130 : vector<1x32xf32> to vector<8x32xf32>
      %132 = arith.addf %129, %131 : vector<8x32xf32>
      %133 = vector.shape_cast %127 : vector<8x32xf32> to vector<1x8x32xf32>
      %134 = tpu.transpose %133, [0, 2, 1] : vector<1x8x32xf32> -> vector<1x32x8xf32>
      %135 = arith.truncf %134 : vector<1x32x8xf32> to vector<1x32x8xbf16>
      %c0_79 = arith.constant 0 : index
      %c0_80 = arith.constant 0 : index
      %c0_81 = arith.constant 0 : index
      %136 = vector.load %arg13[%c0_79, %c0_80, %c0_81] : memref<1x32x8xbf16, #tpu.memory_space<vmem>>, vector<1x32x8xbf16>
      tpu.vector_store %arg13[%c0_79, %c0_80, %c0_81], %135 {strides = array<i32>} : memref<1x32x8xbf16, #tpu.memory_space<vmem>>, vector<1x32x8xbf16>,
      %137 = vector.shape_cast %132 : vector<8x32xf32> to vector<1x8x32xf32>
      %138 = arith.truncf %137 : vector<1x8x32xf32> to vector<1x8x32xbf16>
      %c0_82 = arith.constant 0 : index
      %c0_83 = arith.constant 0 : index
      %c0_84 = arith.constant 0 : index
      %139 = vector.load %arg14[%c0_82, %c0_83, %c0_84] : memref<1x8x32xbf16, #tpu.memory_space<vmem>>, vector<1x8x32xbf16>
      tpu.vector_store %arg14[%c0_82, %c0_83, %c0_84], %138 {strides = array<i32>} : memref<1x8x32xbf16, #tpu.memory_space<vmem>>, vector<1x8x32xbf16>,
    } else {
    }
    %c8_i32 = arith.constant 8 : i32
    %3 = arith.muli %arg1, %c8_i32 : i32
    %4 = tpu.assume_multiple %3, 8 : i32
    %c0 = arith.constant 0 : index
    %5 = arith.index_cast %4 : i32 to index
    %c0_1 = arith.constant 0 : index
    %6 = vector.load %arg2[%c0, %5, %c0_1] : memref<1x8x32xbf16, #tpu.memory_space<vmem>>, vector<1x8x32xbf16>
    %7 = vector.shape_cast %6 : vector<1x8x32xbf16> to vector<8x32xbf16>
    %c0_2 = arith.constant 0 : index
    %c0_3 = arith.constant 0 : index
    %8 = vector.load %arg4[%c0_2, %c0_3] : memref<32x32xbf16, #tpu.memory_space<vmem>>, vector<32x32xbf16>
    %cst = arith.constant dense<0.000000e+00> : vector<8x32xf32>
    %9 = tpu.matmul %7, %8, %cst {dimension_numbers = #tpu.dot_dimension_numbers<[1], [0], [0], [1], [0, 0, 1, 1], [], []>} : vector<8x32xbf16>, vector<32x32xbf16>, vector<8x32xf32> -> vector<8x32xf32>
    %c0_4 = arith.constant 0 : index
    %c0_5 = arith.constant 0 : index
    %10 = vector.load %arg5[%c0_4, %c0_5] : memref<1x32xf32, #tpu.memory_space<vmem>>, vector<1x32xf32>
    %11 = vector.broadcast %10 : vector<1x32xf32> to vector<8x32xf32>
    %12 = arith.addf %9, %11 : vector<8x32xf32>
    %13 = vector.shape_cast %12 : vector<8x32xf32> to vector<1x8x32xf32>
    %c0_6 = arith.constant 0 : index
    %c0_7 = arith.constant 0 : index
    %c0_8 = arith.constant 0 : index
    %14 = vector.load %arg3[%c0_6, %c0_7, %c0_8] : memref<1x1x8xf32, #tpu.memory_space<vmem>>, vector<1x1x8xf32>
    %cst_9 = arith.constant 0.000000e+00 : f32
    %15 = vector.broadcast %cst_9 : f32 to vector<1x1x8xf32>
    %16 = arith.cmpf oeq, %14, %15 : vector<1x1x8xf32>
    %cst_10 = arith.constant -1.70141173E+38 : f32
    %cst_11 = arith.constant 0.000000e+00 : f32
    %17 = vector.broadcast %cst_10 : f32 to vector<1x1x8xf32>
    %18 = vector.broadcast %cst_11 : f32 to vector<1x1x8xf32>
    %19 = arith.select %16, %17, %18 : vector<1x1x8xi1>, vector<1x1x8xf32>
    %c0_12 = arith.constant 0 : index
    %c0_13 = arith.constant 0 : index
    %20 = vector.load %arg11[%c0_12, %c0_13] : memref<1x32xf32, #tpu.memory_space<vmem>>, vector<1x32xf32>
    %21 = vector.shape_cast %20 : vector<1x32xf32> to vector<1x32xf32>
    %22 = vector.broadcast %21 : vector<1x32xf32> to vector<8x32xf32>
    %23 = vector.extract_strided_slice %13 {offsets = [0, 0, 0], sizes = [1, 8, 8], strides = [1, 1, 1]} : vector<1x8x32xf32> to vector<1x8x8xf32>
    %24 = arith.truncf %23 : vector<1x8x8xf32> to vector<1x8x8xbf16>
    %c0_14 = arith.constant 0 : index
    %c0_15 = arith.constant 0 : index
    %c0_16 = arith.constant 0 : index
    %25 = vector.load %arg13[%c0_14, %c0_15, %c0_16] : memref<1x32x8xbf16, #tpu.memory_space<vmem>>, vector<1x8x8xbf16>
    %c0_17 = arith.constant 0 : index
    %c0_18 = arith.constant 0 : index
    %c0_19 = arith.constant 0 : index
    %26 = vector.load %arg14[%c0_17, %c0_18, %c0_19] : memref<1x8x32xbf16, #tpu.memory_space<vmem>>, vector<1x8x8xbf16>
    "tpu.trace_start"() <{level = 10 : i32, message = "bqd,bdk->bqk"}> : () -> ()
    %cst_20 = arith.constant dense<0.000000e+00> : vector<1x8x8xf32>
    %27 = tpu.matmul %24, %25, %cst_20 {dimension_numbers = #tpu.dot_dimension_numbers<[2], [1], [1], [2], [0, 0, 0, 1, 1, 2], [0], [0]>} : vector<1x8x8xbf16>, vector<1x8x8xbf16>, vector<1x8x8xf32> -> vector<1x8x8xf32>
    "tpu.trace_stop"() : () -> ()
    %28 = vector.broadcast %19 : vector<1x1x8xf32> to vector<1x8x8xf32>
    %29 = arith.addf %27, %28 : vector<1x8x8xf32>
    %cst_21 = arith.constant dense<0xFF800000> : vector<1x8xf32>
    %30 = vector.multi_reduction <maximumf>, %29, %cst_21 [2] : vector<1x8x8xf32> to vector<1x8xf32>
    %31 = vector.shape_cast %30 : vector<1x8xf32> to vector<1x8x1xf32>
    %32 = vector.broadcast %31 : vector<1x8x1xf32> to vector<1x8x8xf32>
    %33 = arith.subf %29, %32 : vector<1x8x8xf32>
    %34 = math.exp %33 : vector<1x8x8xf32>
    %cst_22 = arith.constant dense<0.000000e+00> : vector<1x8xf32>
    %35 = vector.multi_reduction <add>, %34, %cst_22 [2] : vector<1x8x8xf32> to vector<1x8xf32>
    %36 = vector.shape_cast %35 : vector<1x8xf32> to vector<1x8x1xf32>
    %37 = tpu.reciprocal %36 : vector<1x8x1xf32> -> vector<1x8x1xf32>
    %38 = vector.broadcast %37 : vector<1x8x1xf32> to vector<1x8x8xf32>
    %39 = arith.mulf %34, %38 : vector<1x8x8xf32>
    %40 = arith.truncf %39 : vector<1x8x8xf32> to vector<1x8x8xbf16>
    "tpu.trace_start"() <{level = 10 : i32, message = "bqk,bkd->bqd"}> : () -> ()
    %cst_23 = arith.constant dense<0.000000e+00> : vector<1x8x8xf32>
    %41 = tpu.matmul %40, %26, %cst_23 {dimension_numbers = #tpu.dot_dimension_numbers<[2], [1], [1], [2], [0, 0, 0, 1, 1, 2], [0], [0]>} : vector<1x8x8xbf16>, vector<1x8x8xbf16>, vector<1x8x8xf32> -> vector<1x8x8xf32>
    "tpu.trace_stop"() : () -> ()
    %42 = vector.shape_cast %41 : vector<1x8x8xf32> to vector<8x8xf32>
    %43 = arith.truncf %42 : vector<8x8xf32> to vector<8x8xbf16>
    %c0_24 = arith.constant 0 : index
    %c0_25 = arith.constant 0 : index
    %44 = vector.load %arg10[%c0_24, %c0_25] : memref<32x32xbf16, #tpu.memory_space<vmem>>, vector<8x32xbf16>
    %cst_26 = arith.constant dense<0.000000e+00> : vector<8x32xf32>
    %45 = tpu.matmul %43, %44, %cst_26 {dimension_numbers = #tpu.dot_dimension_numbers<[1], [0], [0], [1], [0, 0, 1, 1], [], []>} : vector<8x8xbf16>, vector<8x32xbf16>, vector<8x32xf32> -> vector<8x32xf32>
    %46 = arith.addf %22, %45 : vector<8x32xf32>
    %47 = vector.extract_strided_slice %13 {offsets = [0, 0, 8], sizes = [1, 8, 8], strides = [1, 1, 1]} : vector<1x8x32xf32> to vector<1x8x8xf32>
    %48 = arith.truncf %47 : vector<1x8x8xf32> to vector<1x8x8xbf16>
    %c0_27 = arith.constant 0 : index
    %c8 = arith.constant 8 : index
    %c0_28 = arith.constant 0 : index
    %49 = vector.load %arg13[%c0_27, %c8, %c0_28] : memref<1x32x8xbf16, #tpu.memory_space<vmem>>, vector<1x8x8xbf16>
    %c0_29 = arith.constant 0 : index
    %c0_30 = arith.constant 0 : index
    %c8_31 = arith.constant 8 : index
    %50 = vector.load %arg14[%c0_29, %c0_30, %c8_31] : memref<1x8x32xbf16, #tpu.memory_space<vmem>>, vector<1x8x8xbf16>
    "tpu.trace_start"() <{level = 10 : i32, message = "bqd,bdk->bqk"}> : () -> ()
    %cst_32 = arith.constant dense<0.000000e+00> : vector<1x8x8xf32>
    %51 = tpu.matmul %48, %49, %cst_32 {dimension_numbers = #tpu.dot_dimension_numbers<[2], [1], [1], [2], [0, 0, 0, 1, 1, 2], [0], [0]>} : vector<1x8x8xbf16>, vector<1x8x8xbf16>, vector<1x8x8xf32> -> vector<1x8x8xf32>
    "tpu.trace_stop"() : () -> ()
    %52 = vector.broadcast %19 : vector<1x1x8xf32> to vector<1x8x8xf32>
    %53 = arith.addf %51, %52 : vector<1x8x8xf32>
    %cst_33 = arith.constant dense<0xFF800000> : vector<1x8xf32>
    %54 = vector.multi_reduction <maximumf>, %53, %cst_33 [2] : vector<1x8x8xf32> to vector<1x8xf32>
    %55 = vector.shape_cast %54 : vector<1x8xf32> to vector<1x8x1xf32>
    %56 = vector.broadcast %55 : vector<1x8x1xf32> to vector<1x8x8xf32>
    %57 = arith.subf %53, %56 : vector<1x8x8xf32>
    %58 = math.exp %57 : vector<1x8x8xf32>
    %cst_34 = arith.constant dense<0.000000e+00> : vector<1x8xf32>
    %59 = vector.multi_reduction <add>, %58, %cst_34 [2] : vector<1x8x8xf32> to vector<1x8xf32>
    %60 = vector.shape_cast %59 : vector<1x8xf32> to vector<1x8x1xf32>
    %61 = tpu.reciprocal %60 : vector<1x8x1xf32> -> vector<1x8x1xf32>
    %62 = vector.broadcast %61 : vector<1x8x1xf32> to vector<1x8x8xf32>
    %63 = arith.mulf %58, %62 : vector<1x8x8xf32>
    %64 = arith.truncf %63 : vector<1x8x8xf32> to vector<1x8x8xbf16>
    "tpu.trace_start"() <{level = 10 : i32, message = "bqk,bkd->bqd"}> : () -> ()
    %cst_35 = arith.constant dense<0.000000e+00> : vector<1x8x8xf32>
    %65 = tpu.matmul %64, %50, %cst_35 {dimension_numbers = #tpu.dot_dimension_numbers<[2], [1], [1], [2], [0, 0, 0, 1, 1, 2], [0], [0]>} : vector<1x8x8xbf16>, vector<1x8x8xbf16>, vector<1x8x8xf32> -> vector<1x8x8xf32>
    "tpu.trace_stop"() : () -> ()
    %66 = vector.shape_cast %65 : vector<1x8x8xf32> to vector<8x8xf32>
    %67 = arith.truncf %66 : vector<8x8xf32> to vector<8x8xbf16>
    %c8_36 = arith.constant 8 : index
    %c0_37 = arith.constant 0 : index
    %68 = vector.load %arg10[%c8_36, %c0_37] : memref<32x32xbf16, #tpu.memory_space<vmem>>, vector<8x32xbf16>
    %cst_38 = arith.constant dense<0.000000e+00> : vector<8x32xf32>
    %69 = tpu.matmul %67, %68, %cst_38 {dimension_numbers = #tpu.dot_dimension_numbers<[1], [0], [0], [1], [0, 0, 1, 1], [], []>} : vector<8x8xbf16>, vector<8x32xbf16>, vector<8x32xf32> -> vector<8x32xf32>
    %70 = arith.addf %46, %69 : vector<8x32xf32>
    %71 = vector.extract_strided_slice %13 {offsets = [0, 0, 16], sizes = [1, 8, 8], strides = [1, 1, 1]} : vector<1x8x32xf32> to vector<1x8x8xf32>
    %72 = arith.truncf %71 : vector<1x8x8xf32> to vector<1x8x8xbf16>
    %c0_39 = arith.constant 0 : index
    %c16 = arith.constant 16 : index
    %c0_40 = arith.constant 0 : index
    %73 = vector.load %arg13[%c0_39, %c16, %c0_40] : memref<1x32x8xbf16, #tpu.memory_space<vmem>>, vector<1x8x8xbf16>
    %c0_41 = arith.constant 0 : index
    %c0_42 = arith.constant 0 : index
    %c16_43 = arith.constant 16 : index
    %74 = vector.load %arg14[%c0_41, %c0_42, %c16_43] : memref<1x8x32xbf16, #tpu.memory_space<vmem>>, vector<1x8x8xbf16>
    "tpu.trace_start"() <{level = 10 : i32, message = "bqd,bdk->bqk"}> : () -> ()
    %cst_44 = arith.constant dense<0.000000e+00> : vector<1x8x8xf32>
    %75 = tpu.matmul %72, %73, %cst_44 {dimension_numbers = #tpu.dot_dimension_numbers<[2], [1], [1], [2], [0, 0, 0, 1, 1, 2], [0], [0]>} : vector<1x8x8xbf16>, vector<1x8x8xbf16>, vector<1x8x8xf32> -> vector<1x8x8xf32>
    "tpu.trace_stop"() : () -> ()
    %76 = vector.broadcast %19 : vector<1x1x8xf32> to vector<1x8x8xf32>
    %77 = arith.addf %75, %76 : vector<1x8x8xf32>
    %cst_45 = arith.constant dense<0xFF800000> : vector<1x8xf32>
    %78 = vector.multi_reduction <maximumf>, %77, %cst_45 [2] : vector<1x8x8xf32> to vector<1x8xf32>
    %79 = vector.shape_cast %78 : vector<1x8xf32> to vector<1x8x1xf32>
    %80 = vector.broadcast %79 : vector<1x8x1xf32> to vector<1x8x8xf32>
    %81 = arith.subf %77, %80 : vector<1x8x8xf32>
    %82 = math.exp %81 : vector<1x8x8xf32>
    %cst_46 = arith.constant dense<0.000000e+00> : vector<1x8xf32>
    %83 = vector.multi_reduction <add>, %82, %cst_46 [2] : vector<1x8x8xf32> to vector<1x8xf32>
    %84 = vector.shape_cast %83 : vector<1x8xf32> to vector<1x8x1xf32>
    %85 = tpu.reciprocal %84 : vector<1x8x1xf32> -> vector<1x8x1xf32>
    %86 = vector.broadcast %85 : vector<1x8x1xf32> to vector<1x8x8xf32>
    %87 = arith.mulf %82, %86 : vector<1x8x8xf32>
    %88 = arith.truncf %87 : vector<1x8x8xf32> to vector<1x8x8xbf16>
    "tpu.trace_start"() <{level = 10 : i32, message = "bqk,bkd->bqd"}> : () -> ()
    %cst_47 = arith.constant dense<0.000000e+00> : vector<1x8x8xf32>
    %89 = tpu.matmul %88, %74, %cst_47 {dimension_numbers = #tpu.dot_dimension_numbers<[2], [1], [1], [2], [0, 0, 0, 1, 1, 2], [0], [0]>} : vector<1x8x8xbf16>, vector<1x8x8xbf16>, vector<1x8x8xf32> -> vector<1x8x8xf32>
    "tpu.trace_stop"() : () -> ()
    %90 = vector.shape_cast %89 : vector<1x8x8xf32> to vector<8x8xf32>
    %91 = arith.truncf %90 : vector<8x8xf32> to vector<8x8xbf16>
    %c16_48 = arith.constant 16 : index
    %c0_49 = arith.constant 0 : index
    %92 = vector.load %arg10[%c16_48, %c0_49] : memref<32x32xbf16, #tpu.memory_space<vmem>>, vector<8x32xbf16>
    %cst_50 = arith.constant dense<0.000000e+00> : vector<8x32xf32>
    %93 = tpu.matmul %91, %92, %cst_50 {dimension_numbers = #tpu.dot_dimension_numbers<[1], [0], [0], [1], [0, 0, 1, 1], [], []>} : vector<8x8xbf16>, vector<8x32xbf16>, vector<8x32xf32> -> vector<8x32xf32>
    %94 = arith.addf %70, %93 : vector<8x32xf32>
    %95 = vector.extract_strided_slice %13 {offsets = [0, 0, 24], sizes = [1, 8, 8], strides = [1, 1, 1]} : vector<1x8x32xf32> to vector<1x8x8xf32>
    %96 = arith.truncf %95 : vector<1x8x8xf32> to vector<1x8x8xbf16>
    %c0_51 = arith.constant 0 : index
    %c24 = arith.constant 24 : index
    %c0_52 = arith.constant 0 : index
    %97 = vector.load %arg13[%c0_51, %c24, %c0_52] : memref<1x32x8xbf16, #tpu.memory_space<vmem>>, vector<1x8x8xbf16>
    %c0_53 = arith.constant 0 : index
    %c0_54 = arith.constant 0 : index
    %c24_55 = arith.constant 24 : index
    %98 = vector.load %arg14[%c0_53, %c0_54, %c24_55] : memref<1x8x32xbf16, #tpu.memory_space<vmem>>, vector<1x8x8xbf16>
    "tpu.trace_start"() <{level = 10 : i32, message = "bqd,bdk->bqk"}> : () -> ()
    %cst_56 = arith.constant dense<0.000000e+00> : vector<1x8x8xf32>
    %99 = tpu.matmul %96, %97, %cst_56 {dimension_numbers = #tpu.dot_dimension_numbers<[2], [1], [1], [2], [0, 0, 0, 1, 1, 2], [0], [0]>} : vector<1x8x8xbf16>, vector<1x8x8xbf16>, vector<1x8x8xf32> -> vector<1x8x8xf32>
    "tpu.trace_stop"() : () -> ()
    %100 = vector.broadcast %19 : vector<1x1x8xf32> to vector<1x8x8xf32>
    %101 = arith.addf %99, %100 : vector<1x8x8xf32>
    %cst_57 = arith.constant dense<0xFF800000> : vector<1x8xf32>
    %102 = vector.multi_reduction <maximumf>, %101, %cst_57 [2] : vector<1x8x8xf32> to vector<1x8xf32>
    %103 = vector.shape_cast %102 : vector<1x8xf32> to vector<1x8x1xf32>
    %104 = vector.broadcast %103 : vector<1x8x1xf32> to vector<1x8x8xf32>
    %105 = arith.subf %101, %104 : vector<1x8x8xf32>
    %106 = math.exp %105 : vector<1x8x8xf32>
    %cst_58 = arith.constant dense<0.000000e+00> : vector<1x8xf32>
    %107 = vector.multi_reduction <add>, %106, %cst_58 [2] : vector<1x8x8xf32> to vector<1x8xf32>
    %108 = vector.shape_cast %107 : vector<1x8xf32> to vector<1x8x1xf32>
    %109 = tpu.reciprocal %108 : vector<1x8x1xf32> -> vector<1x8x1xf32>
    %110 = vector.broadcast %109 : vector<1x8x1xf32> to vector<1x8x8xf32>
    %111 = arith.mulf %106, %110 : vector<1x8x8xf32>
    %112 = arith.truncf %111 : vector<1x8x8xf32> to vector<1x8x8xbf16>
    "tpu.trace_start"() <{level = 10 : i32, message = "bqk,bkd->bqd"}> : () -> ()
    %cst_59 = arith.constant dense<0.000000e+00> : vector<1x8x8xf32>
    %113 = tpu.matmul %112, %98, %cst_59 {dimension_numbers = #tpu.dot_dimension_numbers<[2], [1], [1], [2], [0, 0, 0, 1, 1, 2], [0], [0]>} : vector<1x8x8xbf16>, vector<1x8x8xbf16>, vector<1x8x8xf32> -> vector<1x8x8xf32>
    "tpu.trace_stop"() : () -> ()
    %114 = vector.shape_cast %113 : vector<1x8x8xf32> to vector<8x8xf32>
    %115 = arith.truncf %114 : vector<8x8xf32> to vector<8x8xbf16>
    %c24_60 = arith.constant 24 : index
    %c0_61 = arith.constant 0 : index
    %116 = vector.load %arg10[%c24_60, %c0_61] : memref<32x32xbf16, #tpu.memory_space<vmem>>, vector<8x32xbf16>
    %cst_62 = arith.constant dense<0.000000e+00> : vector<8x32xf32>
    %117 = tpu.matmul %115, %116, %cst_62 {dimension_numbers = #tpu.dot_dimension_numbers<[1], [0], [0], [1], [0, 0, 1, 1], [], []>} : vector<8x8xbf16>, vector<8x32xbf16>, vector<8x32xf32> -> vector<8x32xf32>
    %118 = arith.addf %94, %117 : vector<8x32xf32>
    %119 = vector.shape_cast %118 : vector<8x32xf32> to vector<1x8x32xf32>
    %c0_63 = arith.constant 0 : index
    %c0_64 = arith.constant 0 : index
    %c0_65 = arith.constant 0 : index
    %120 = vector.load %arg12[%c0_63, %c0_64, %c0_65] : memref<1x8x32xf32, #tpu.memory_space<vmem>>, vector<1x8x32xf32>
    tpu.vector_store %arg12[%c0_63, %c0_64, %c0_65], %119 {strides = array<i32>} : memref<1x8x32xf32, #tpu.memory_space<vmem>>, vector<1x8x32xf32>,
    return
  }
  func.func @transform_0(%arg0: i32, %arg1: i32) -> (i32, i32, i32) {
    %c0_i32 = arith.constant 0 : i32
    %c0_i32_0 = arith.constant 0 : i32
    %c0_i32_1 = arith.constant 0 : i32
    return %arg0, %c0_i32, %c0_i32_0 : i32, i32, i32
  }
  func.func @transform_1(%arg0: i32, %arg1: i32) -> (i32, i32, i32) {
    %c0_i32 = arith.constant 0 : i32
    %c0_i32_0 = arith.constant 0 : i32
    %c0_i32_1 = arith.constant 0 : i32
    return %arg0, %c0_i32, %c0_i32_0 : i32, i32, i32
  }
  func.func @transform_2(%arg0: i32, %arg1: i32) -> (i32, i32) {
    %c0_i32 = arith.constant 0 : i32
    %c0_i32_0 = arith.constant 0 : i32
    %c0_i32_1 = arith.constant 0 : i32
    return %c0_i32, %c0_i32_0 : i32, i32
  }
  func.func @transform_3(%arg0: i32, %arg1: i32) -> (i32, i32) {
    %c0_i32 = arith.constant 0 : i32
    %c0_i32_0 = arith.constant 0 : i32
    %c0_i32_1 = arith.constant 0 : i32
    return %c0_i32, %c0_i32_0 : i32, i32
  }
  func.func @transform_4(%arg0: i32, %arg1: i32) -> (i32, i32) {
    %c0_i32 = arith.constant 0 : i32
    %c0_i32_0 = arith.constant 0 : i32
    %c0_i32_1 = arith.constant 0 : i32
    return %c0_i32, %c0_i32_0 : i32, i32
  }
  func.func @transform_5(%arg0: i32, %arg1: i32) -> (i32, i32) {
    %c0_i32 = arith.constant 0 : i32
    %c0_i32_0 = arith.constant 0 : i32
    %c0_i32_1 = arith.constant 0 : i32
    return %c0_i32, %c0_i32_0 : i32, i32
  }
  func.func @transform_6(%arg0: i32, %arg1: i32) -> (i32, i32) {
    %c0_i32 = arith.constant 0 : i32
    %c0_i32_0 = arith.constant 0 : i32
    %c0_i32_1 = arith.constant 0 : i32
    return %c0_i32, %c0_i32_0 : i32, i32
  }
  func.func @transform_7(%arg0: i32, %arg1: i32) -> (i32, i32) {
    %c0_i32 = arith.constant 0 : i32
    %c0_i32_0 = arith.constant 0 : i32
    %c0_i32_1 = arith.constant 0 : i32
    return %c0_i32, %c0_i32_0 : i32, i32
  }
  func.func @transform_8(%arg0: i32, %arg1: i32) -> (i32, i32) {
    %c0_i32 = arith.constant 0 : i32
    %c0_i32_0 = arith.constant 0 : i32
    %c0_i32_1 = arith.constant 0 : i32
    return %c0_i32, %c0_i32_0 : i32, i32
  }
  func.func @transform_9(%arg0: i32, %arg1: i32) -> (i32, i32) {
    %c0_i32 = arith.constant 0 : i32
    %c0_i32_0 = arith.constant 0 : i32
    %c0_i32_1 = arith.constant 0 : i32
    return %c0_i32, %c0_i32_0 : i32, i32
  }
  func.func @transform_10(%arg0: i32, %arg1: i32) -> (i32, i32, i32) {
    %c0_i32 = arith.constant 0 : i32
    %c0_i32_0 = arith.constant 0 : i32
    return %arg0, %arg1, %c0_i32 : i32, i32, i32
  }
}

</mosaic_0001>

<llo_original>
// kernel: tpu_custom_call.1
$region0: #{tpu_custom_call.1}
  #allocation0 [shape = 'u32[]', space=smem, size = 0x4, offset = 0x4, fixed_abs, tag = 'smem constant byte address 0x4 - core index']
  #allocation1 [shape = 'u32[72,128]{1,0:T(1,128)}', space=vmem, size = 0x9000, scoped, tag = 'internal scratch']
  #allocation2 [shape = 'bf16[1,32,8]{2,1,0:T(8,128)(2,1)}', space=vmem, size = 0x2000, scoped, tag = 'scratch operand']
  #allocation3 [shape = 'bf16[1,8,32]{2,1,0:T(8,128)(2,1)}', space=vmem, size = 0x800, scoped, tag = 'scratch operand']
  %s0 = inlined_call_operand.hbm [shape: bf16[2,8,32], index: 0, kind: input, shape index: {}]
  %s1 = inlined_call_operand.hbm [shape: f32[2,1,8], index: 1, kind: input, shape index: {}]
  %s2 = inlined_call_operand.hbm [shape: bf16[32,32], index: 2, kind: input, shape index: {}]
  %s3 = inlined_call_operand.vmem [shape: f32[1,32], index: 3, kind: input, shape index: {}]
  %s4 = inlined_call_operand.hbm [shape: bf16[32,32], index: 4, kind: input, shape index: {}]
  %s5 = inlined_call_operand.vmem [shape: f32[1,32], index: 5, kind: input, shape index: {}]
  %s6 = inlined_call_operand.hbm [shape: bf16[32,32], index: 6, kind: input, shape index: {}]
  %s7 = inlined_call_operand.vmem [shape: f32[1,32], index: 7, kind: input, shape index: {}]
  %s8 = inlined_call_operand.hbm [shape: bf16[32,32], index: 8, kind: input, shape index: {}]
  %s9 = inlined_call_operand.vmem [shape: f32[1,32], index: 9, kind: input, shape index: {}]
  %s10 = inlined_call_operand.hbm [shape: f32[2,8,32], index: 10, kind: output, shape index: {}]
  %s11 = sld [smem:[#allocation0]]
  $region101: #{tpu_custom_call.1} parent=0
    _
  %s13 = ssub.s32 1, %s11
  %s14 = scalar_select 0, %s13, %s11
  $region1: #{tpu_custom_call.1} parent=0
    #allocation4 [shape = 'u8[4096]{0}', space=vmem, size = 0x1000, scoped, tag = 'input window, operand 0']
    #allocation5 [shape = 's32[2]{0}', space=sflag, size = 0x8, scoped, tag = 'scoped memory for tpu_custom_call.1']
    #allocation6 [shape = 's32[2]{0}', space=sflag, size = 0x8, scoped, tag = 'scoped memory for tpu_custom_call.1']
    #allocation7 [shape = 'u8[1024]{0}', space=vmem, size = 0x400, scoped, tag = 'input window, operand 1']
    #allocation8 [shape = 's32[2]{0}', space=sflag, size = 0x8, scoped, tag = 'scoped memory for tpu_custom_call.1']
    #allocation9 [shape = 'u8[8192]{0}', space=vmem, size = 0x2000, scoped, tag = 'input window, operand 2, single buffered']
    #allocation10 [shape = 'u8[8192]{0}', space=vmem, size = 0x2000, scoped, tag = 'input window, operand 4, single buffered']
    #allocation11 [shape = 's32[1]{0}', space=sflag, size = 0x4, scoped, tag = 'scoped memory for tpu_custom_call.1']
    #allocation12 [shape = 'u8[8192]{0}', space=vmem, size = 0x2000, scoped, tag = 'input window, operand 6, single buffered']
    #allocation13 [shape = 'u8[8192]{0}', space=vmem, size = 0x2000, scoped, tag = 'input window, operand 8, single buffered']
    #allocation14 [shape = 's32[1]{0}', space=sflag, size = 0x4, scoped, tag = 'scoped memory for tpu_custom_call.1']
    #allocation15 [shape = 'u8[8192]{0}', space=vmem, size = 0x2000, scoped, tag = 'output window, operand 0']
    %15 = vsyncpa [#allocation5], 0
    %s16 = scalar_lea.sflag [#allocation5], 1
    %17 = vsyncpa %s16, 0
    %18 = vsyncpa [#allocation8], 0
    %s19 = scalar_lea.sflag [#allocation8], 1
    %20 = vsyncpa %s19, 0
    %21 = vsyncpa [#allocation11], 0
    %22 = vsyncpa [#allocation14], 0
    %23 = vsyncpa [#allocation6], 0
    %s24 = scalar_lea.sflag [#allocation6], 1
    %25 = vsyncpa %s24, 0
    loop: start=0, step=1, limit=4
    $region2: #{tpu_custom_call.1} parent=1 // loop_pre_header
      _
    $region3: #{tpu_custom_call.1} parent=1 // loop_header
      %s27 = sphi 0, %s31
      %p28 = scmp.ge.s32.totalorder %s27, 4
      %s34 = sphi 0, %s46
      %s35 = sphi 0, %s42
      %s36 = sphi 0, %s34
      %s37 = sphi 0, %s35
      %s38 = sphi 0, %s36
      %s39 = sphi 0, %s37
      %s49 = sphi 0, %s51
      %s52 = sphi 0, %s49
      %s53 = sphi 0, %s52
      %s69 = sphi 0, %s53
      %s75 = sphi 0, %s77
      %s78 = sphi 0, %s75
      %s79 = sphi 0, %s78
      %s95 = sphi 0, %s79
      %s99 = sphi 0, %s99
      %s101 = sphi 0, %s99
      %s102 = sphi 0, %s101
      %s116 = sphi 0, %s102
      %s120 = sphi 0, %s120
      %s122 = sphi 0, %s120
      %s123 = sphi 0, %s122
      %s137 = sphi 0, %s123
      %s141 = sphi 0, %s141
      %s143 = sphi 0, %s141
      %s144 = sphi 0, %s143
      %s158 = sphi 0, %s144
      %s162 = sphi 0, %s162
      %s164 = sphi 0, %s162
      %s165 = sphi 0, %s164
      %s179 = sphi 0, %s165
      %s183 = sphi 0, %s183
      %s185 = sphi 0, %s183
      %s186 = sphi 0, %s185
      %s200 = sphi 0, %s186
      %s204 = sphi 0, %s204
      %s206 = sphi 0, %s204
      %s207 = sphi 0, %s206
      %s221 = sphi 0, %s207
      %s225 = sphi 0, %s225
      %s227 = sphi 0, %s225
      %s228 = sphi 0, %s227
      %s242 = sphi 0, %s228
      %s246 = sphi 0, %s246
      %s248 = sphi 0, %s246
      %s249 = sphi 0, %s248
      %s263 = sphi 0, %s249
      %s271 = sphi 0, %s273
      %s274 = sphi 0, %s271
      %s275 = sphi 0, %s274
      %s291 = sphi 0, %s275
    $region4: #{tpu_custom_call.1} parent=1 // loop_header_branch
      %30 = sbr.rel (%p28) target = $region8
    $region5: #{tpu_custom_call.1} parent=1 // loop_body
      %s32 = ssub.s32 %s27, 1
      %s33 = ssub.s32 %s27, 2
      %s40 = sadd.s32 1, %s35
      %p41 = scmp.ge.s32.totalorder %s40, 1
      %s42 = scalar_select %p41, 0, %s40
      %s43 = sadd.s32 1, %s34
      %s44 = scalar_select %p41, %s43, %s34
      %p45 = scmp.ge.s32.totalorder %s44, 2
      %s46 = scalar_select %p45, 0, %s44
      %s47 = ssub.s32 %s34, %s46
      %p48 = scmp.eq.s32.totalorder %s47, 0
      %s50 = sadd.s32 %s49, 1
      %s51 = scalar_select %p48, %s49, %s50
      %p54 = pneg %p48
      %p55 = scmp.eq.s32.totalorder %s27, 1
      %p56 = por %p54, %p55
      %p57 = scmp.ne.s32.totalorder %s49, %s52
      %p58 = scmp.eq.s32.totalorder %s27, 0
      %p59 = por %p57, %p58
      %p60 = scmp.ne.s32.totalorder %s49, %s52
      %p61 = scmp.eq.s32.totalorder %s32, 1
      %p62 = por %p60, %p61
      %p63 = scmp.ne.s32.totalorder %s52, %s53
      %p64 = scmp.eq.s32.totalorder %s32, 0
      %p65 = por %p63, %p64
      %p66 = scmp.ne.s32.totalorder %s52, %s53
      %p67 = scmp.eq.s32.totalorder %s33, 1
      %p68 = por %p66, %p67
      %p70 = scmp.ne.s32.totalorder %s53, %s69
      %p71 = scmp.eq.s32.totalorder %s33, 0
      %p72 = por %p70, %p71
      %s73 = ssub.s32 %s34, %s46
      %p74 = scmp.eq.s32.totalorder %s73, 0
      %s76 = sadd.s32 %s75, 1
      %s77 = scalar_select %p74, %s75, %s76
      %p80 = pneg %p74
      %p81 = scmp.eq.s32.totalorder %s27, 1
      %p82 = por %p80, %p81
      %p83 = scmp.ne.s32.totalorder %s75, %s78
      %p84 = scmp.eq.s32.totalorder %s27, 0
      %p85 = por %p83, %p84
      %p86 = scmp.ne.s32.totalorder %s75, %s78
      %p87 = scmp.eq.s32.totalorder %s32, 1
      %p88 = por %p86, %p87
      %p89 = scmp.ne.s32.totalorder %s78, %s79
      %p90 = scmp.eq.s32.totalorder %s32, 0
      %p91 = por %p89, %p90
      %p92 = scmp.ne.s32.totalorder %s78, %s79
      %p93 = scmp.eq.s32.totalorder %s33, 1
      %p94 = por %p92, %p93
      %p96 = scmp.ne.s32.totalorder %s79, %s95
      %p97 = scmp.eq.s32.totalorder %s33, 0
      %p98 = por %p96, %p97
      %s100 = sadd.s32 %s99, 1
      %p103 = scmp.eq.s32.totalorder %s27, 1
      %p104 = scmp.ne.s32.totalorder %s99, %s101
      %p105 = scmp.eq.s32.totalorder %s27, 0
      %p106 = por %p104, %p105
      %p107 = scmp.ne.s32.totalorder %s99, %s101
      %p108 = scmp.eq.s32.totalorder %s32, 1
      %p109 = por %p107, %p108
      %p110 = scmp.ne.s32.totalorder %s101, %s102
      %p111 = scmp.eq.s32.totalorder %s32, 0
      %p112 = por %p110, %p111
      %p113 = scmp.ne.s32.totalorder %s101, %s102
      %p114 = scmp.eq.s32.totalorder %s33, 1
      %p115 = por %p113, %p114
      %p117 = scmp.ne.s32.totalorder %s102, %s116
      %p118 = scmp.eq.s32.totalorder %s33, 0
      %p119 = por %p117, %p118
      %s121 = sadd.s32 %s120, 1
      %p124 = scmp.eq.s32.totalorder %s27, 1
      %p125 = scmp.ne.s32.totalorder %s120, %s122
      %p126 = scmp.eq.s32.totalorder %s27, 0
      %p127 = por %p125, %p126
      %p128 = scmp.ne.s32.totalorder %s120, %s122
      %p129 = scmp.eq.s32.totalorder %s32, 1
      %p130 = por %p128, %p129
      %p131 = scmp.ne.s32.totalorder %s122, %s123
      %p132 = scmp.eq.s32.totalorder %s32, 0
      %p133 = por %p131, %p132
      %p134 = scmp.ne.s32.totalorder %s122, %s123
      %p135 = scmp.eq.s32.totalorder %s33, 1
      %p136 = por %p134, %p135
      %p138 = scmp.ne.s32.totalorder %s123, %s137
      %p139 = scmp.eq.s32.totalorder %s33, 0
      %p140 = por %p138, %p139
      %s142 = sadd.s32 %s141, 1
      %p145 = scmp.eq.s32.totalorder %s27, 1
      %p146 = scmp.ne.s32.totalorder %s141, %s143
      %p147 = scmp.eq.s32.totalorder %s27, 0
      %p148 = por %p146, %p147
      %p149 = scmp.ne.s32.totalorder %s141, %s143
      %p150 = scmp.eq.s32.totalorder %s32, 1
      %p151 = por %p149, %p150
      %p152 = scmp.ne.s32.totalorder %s143, %s144
      %p153 = scmp.eq.s32.totalorder %s32, 0
      %p154 = por %p152, %p153
      %p155 = scmp.ne.s32.totalorder %s143, %s144
      %p156 = scmp.eq.s32.totalorder %s33, 1
      %p157 = por %p155, %p156
      %p159 = scmp.ne.s32.totalorder %s144, %s158
      %p160 = scmp.eq.s32.totalorder %s33, 0
      %p161 = por %p159, %p160
      %s163 = sadd.s32 %s162, 1
      %p166 = scmp.eq.s32.totalorder %s27, 1
      %p167 = scmp.ne.s32.totalorder %s162, %s164
      %p168 = scmp.eq.s32.totalorder %s27, 0
      %p169 = por %p167, %p168
      %p170 = scmp.ne.s32.totalorder %s162, %s164
      %p171 = scmp.eq.s32.totalorder %s32, 1
      %p172 = por %p170, %p171
      %p173 = scmp.ne.s32.totalorder %s164, %s165
      %p174 = scmp.eq.s32.totalorder %s32, 0
      %p175 = por %p173, %p174
      %p176 = scmp.ne.s32.totalorder %s164, %s165
      %p177 = scmp.eq.s32.totalorder %s33, 1
      %p178 = por %p176, %p177
      %p180 = scmp.ne.s32.totalorder %s165, %s179
      %p181 = scmp.eq.s32.totalorder %s33, 0
      %p182 = por %p180, %p181
      %s184 = sadd.s32 %s183, 1
      %p187 = scmp.eq.s32.totalorder %s27, 1
      %p188 = scmp.ne.s32.totalorder %s183, %s185
      %p189 = scmp.eq.s32.totalorder %s27, 0
      %p190 = por %p188, %p189
      %p191 = scmp.ne.s32.totalorder %s183, %s185
      %p192 = scmp.eq.s32.totalorder %s32, 1
      %p193 = por %p191, %p192
      %p194 = scmp.ne.s32.totalorder %s185, %s186
      %p195 = scmp.eq.s32.totalorder %s32, 0
      %p196 = por %p194, %p195
      %p197 = scmp.ne.s32.totalorder %s185, %s186
      %p198 = scmp.eq.s32.totalorder %s33, 1
      %p199 = por %p197, %p198
      %p201 = scmp.ne.s32.totalorder %s186, %s200
      %p202 = scmp.eq.s32.totalorder %s33, 0
      %p203 = por %p201, %p202
      %s205 = sadd.s32 %s204, 1
      %p208 = scmp.eq.s32.totalorder %s27, 1
      %p209 = scmp.ne.s32.totalorder %s204, %s206
      %p210 = scmp.eq.s32.totalorder %s27, 0
      %p211 = por %p209, %p210
      %p212 = scmp.ne.s32.totalorder %s204, %s206
      %p213 = scmp.eq.s32.totalorder %s32, 1
      %p214 = por %p212, %p213
      %p215 = scmp.ne.s32.totalorder %s206, %s207
      %p216 = scmp.eq.s32.totalorder %s32, 0
      %p217 = por %p215, %p216
      %p218 = scmp.ne.s32.totalorder %s206, %s207
      %p219 = scmp.eq.s32.totalorder %s33, 1
      %p220 = por %p218, %p219
      %p222 = scmp.ne.s32.totalorder %s207, %s221
      %p223 = scmp.eq.s32.totalorder %s33, 0
      %p224 = por %p222, %p223
      %s226 = sadd.s32 %s225, 1
      %p229 = scmp.eq.s32.totalorder %s27, 1
      %p230 = scmp.ne.s32.totalorder %s225, %s227
      %p231 = scmp.eq.s32.totalorder %s27, 0
      %p232 = por %p230, %p231
      %p233 = scmp.ne.s32.totalorder %s225, %s227
      %p234 = scmp.eq.s32.totalorder %s32, 1
      %p235 = por %p233, %p234
      %p236 = scmp.ne.s32.totalorder %s227, %s228
      %p237 = scmp.eq.s32.totalorder %s32, 0
      %p238 = por %p236, %p237
      %p239 = scmp.ne.s32.totalorder %s227, %s228
      %p240 = scmp.eq.s32.totalorder %s33, 1
      %p241 = por %p239, %p240
      %p243 = scmp.ne.s32.totalorder %s228, %s242
      %p244 = scmp.eq.s32.totalorder %s33, 0
      %p245 = por %p243, %p244
      %s247 = sadd.s32 %s246, 1
      %p250 = scmp.eq.s32.totalorder %s27, 1
      %p251 = scmp.ne.s32.totalorder %s246, %s248
      %p252 = scmp.eq.s32.totalorder %s27, 0
      %p253 = por %p251, %p252
      %p254 = scmp.ne.s32.totalorder %s246, %s248
      %p255 = scmp.eq.s32.totalorder %s32, 1
      %p256 = por %p254, %p255
      %p257 = scmp.ne.s32.totalorder %s248, %s249
      %p258 = scmp.eq.s32.totalorder %s32, 0
      %p259 = por %p257, %p258
      %p260 = scmp.ne.s32.totalorder %s248, %s249
      %p261 = scmp.eq.s32.totalorder %s33, 1
      %p262 = por %p260, %p261
      %p264 = scmp.ne.s32.totalorder %s249, %s263
      %p265 = scmp.eq.s32.totalorder %s33, 0
      %p266 = por %p264, %p265
      %s267 = ssub.s32 %s34, %s46
      %s268 = ssub.s32 %s35, %s42
      %s269 = sor.u32 %s267, %s268
      %p270 = scmp.eq.s32.totalorder %s269, 0
      %s272 = sadd.s32 %s271, 1
      %s273 = scalar_select %p270, %s271, %s272
      %p276 = pneg %p270
      %p277 = scmp.eq.s32.totalorder %s27, 1
      %p278 = por %p276, %p277
      %p279 = scmp.ne.s32.totalorder %s271, %s274
      %p280 = scmp.eq.s32.totalorder %s27, 0
      %p281 = por %p279, %p280
      %p282 = scmp.ne.s32.totalorder %s271, %s274
      %p283 = scmp.eq.s32.totalorder %s32, 1
      %p284 = por %p282, %p283
      %p285 = scmp.ne.s32.totalorder %s274, %s275
      %p286 = scmp.eq.s32.totalorder %s32, 0
      %p287 = por %p285, %p286
      %p288 = scmp.ne.s32.totalorder %s274, %s275
      %p289 = scmp.eq.s32.totalorder %s33, 1
      %p290 = por %p288, %p289
      %p292 = scmp.ne.s32.totalorder %s275, %s291
      %p293 = scmp.eq.s32.totalorder %s33, 0
      %p294 = por %p292, %p293
      %p295 = scmp.le.s32.totalorder 1, %s27
      %p296 = scmp.lt.s32.totalorder %s27, 3
      %p297 = pnand %p295, %p296
      %p298 = pneg %p297
      // Predicated region
      $region9: #{tpu_custom_call.1} parent=5 // pred_check
        _
      $region10: #{tpu_custom_call.1} parent=5 // pred_check_branch
        %300 = sbr.rel (%p297) target = $region12
      $region11: #{tpu_custom_call.1} parent=5 // pred_region
        %s301 = ssub.s32 %s27, 1
        // Predicated region
        $region13: #{tpu_custom_call.1} parent=11 // pred_check
          %p302 = pneg %p112
        $region14: #{tpu_custom_call.1} parent=11 // pred_check_branch
          %304 = sbr.rel (%p302) target = $region16
        $region15: #{tpu_custom_call.1} parent=11 // pred_region
          %306 = vsyncadd [#allocation8], 0
          %s307 = sshll.u32 %s2, 4
          %s308 = int_to_ptr.hbm [resolvable:$true] %s307
          %s309 = sshll.u32 [#allocation9], 4
          %s310 = int_to_ptr.vmem [resolvable:$true] %s309
          %315 = dma.hbm_to_vmem [thread:$0]  %s308, 256, %s310, [#allocation8], 64, 64, 4
        $region16: #{tpu_custom_call.1} parent=11 // pred_fallthru
          _
        // Predicated region
        $region17: #{tpu_custom_call.1} parent=11 // pred_check
          %p316 = pneg %p133
        $region18: #{tpu_custom_call.1} parent=11 // pred_check_branch
          %318 = sbr.rel (%p316) target = $region20
        $region19: #{tpu_custom_call.1} parent=11 // pred_region
          _
        $region20: #{tpu_custom_call.1} parent=11 // pred_fallthru
          _
        // Predicated region
        $region21: #{tpu_custom_call.1} parent=11 // pred_check
          %p319 = pneg %p154
        $region22: #{tpu_custom_call.1} parent=11 // pred_check_branch
          %321 = sbr.rel (%p319) target = $region24
        $region23: #{tpu_custom_call.1} parent=11 // pred_region
          %323 = vsyncadd [#allocation11], 0
          %s324 = sshll.u32 %s4, 4
          %s325 = int_to_ptr.hbm [resolvable:$true] %s324
          %s326 = sshll.u32 [#allocation10], 4
          %s327 = int_to_ptr.vmem [resolvable:$true] %s326
          %332 = dma.hbm_to_vmem [thread:$0]  %s325, 256, %s327, [#allocation11], 64, 64, 4
        $region24: #{tpu_custom_call.1} parent=11 // pred_fallthru
          _
        // Predicated region
        $region25: #{tpu_custom_call.1} parent=11 // pred_check
          %p333 = pneg %p175
        $region26: #{tpu_custom_call.1} parent=11 // pred_check_branch
          %335 = sbr.rel (%p333) target = $region28
        $region27: #{tpu_custom_call.1} parent=11 // pred_region
          _
        $region28: #{tpu_custom_call.1} parent=11 // pred_fallthru
          _
        // Predicated region
        $region29: #{tpu_custom_call.1} parent=11 // pred_check
          %p336 = pneg %p196
        $region30: #{tpu_custom_call.1} parent=11 // pred_check_branch
          %338 = sbr.rel (%p336) target = $region32
        $region31: #{tpu_custom_call.1} parent=11 // pred_region
          %340 = vsyncadd [#allocation11], 0
          %s341 = sshll.u32 %s6, 4
          %s342 = int_to_ptr.hbm [resolvable:$true] %s341
          %s343 = sshll.u32 [#allocation12], 4
          %s344 = int_to_ptr.vmem [resolvable:$true] %s343
          %349 = dma.hbm_to_vmem [thread:$0]  %s342, 256, %s344, [#allocation11], 64, 64, 4
        $region32: #{tpu_custom_call.1} parent=11 // pred_fallthru
          _
        // Predicated region
        $region33: #{tpu_custom_call.1} parent=11 // pred_check
          %p350 = pneg %p217
        $region34: #{tpu_custom_call.1} parent=11 // pred_check_branch
          %352 = sbr.rel (%p350) target = $region36
        $region35: #{tpu_custom_call.1} parent=11 // pred_region
          _
        $region36: #{tpu_custom_call.1} parent=11 // pred_fallthru
          _
        // Predicated region
        $region37: #{tpu_custom_call.1} parent=11 // pred_check
          %p353 = pneg %p238
        $region38: #{tpu_custom_call.1} parent=11 // pred_check_branch
          %355 = sbr.rel (%p353) target = $region40
        $region39: #{tpu_custom_call.1} parent=11 // pred_region
          %357 = vsyncadd [#allocation14], 0
          %s358 = sshll.u32 %s8, 4
          %s359 = int_to_ptr.hbm [resolvable:$true] %s358
          %s360 = sshll.u32 [#allocation13], 4
          %s361 = int_to_ptr.vmem [resolvable:$true] %s360
          %366 = dma.hbm_to_vmem [thread:$0]  %s359, 256, %s361, [#allocation14], 64, 64, 4
        $region40: #{tpu_custom_call.1} parent=11 // pred_fallthru
          _
        // Predicated region
        $region41: #{tpu_custom_call.1} parent=11 // pred_check
          %p367 = pneg %p259
        $region42: #{tpu_custom_call.1} parent=11 // pred_check_branch
          %369 = sbr.rel (%p367) target = $region44
        $region43: #{tpu_custom_call.1} parent=11 // pred_region
          _
        $region44: #{tpu_custom_call.1} parent=11 // pred_fallthru
          _
      $region12: #{tpu_custom_call.1} parent=5 // pred_fallthru
        _
      %p370 = scmp.lt.s32.totalorder %s27, 2
      // Predicated region
      $region45: #{tpu_custom_call.1} parent=5 // pred_check
        %p371 = pneg %p370
      $region46: #{tpu_custom_call.1} parent=5 // pred_check_branch
        %373 = sbr.rel (%p371) target = $region48
      $region47: #{tpu_custom_call.1} parent=5 // pred_region
        // Predicated region
        $region49: #{tpu_custom_call.1} parent=47 // pred_check
          %p374 = pneg %p59
        $region50: #{tpu_custom_call.1} parent=47 // pred_check_branch
          %376 = sbr.rel (%p374) target = $region52
        $region51: #{tpu_custom_call.1} parent=47 // pred_region
          %s377 = sand.u32 %s49, 1
          %s378 = scalar_lea.sflag [#allocation5], %s377
          %s379 = sand.u32 %s49, 1
          %s380 = smul.addr %s379, 4
          %s381 = scalar_lea.vmem [#allocation4], %s380
          %383 = vsyncadd %s378, 0
          %s384 = smul.addr %s34, 4
          %s385 = scalar_lea.hbm %s0, %s384
          %s387 = sshll.u32 %s385, 4
          %s388 = int_to_ptr.hbm [resolvable:$true] %s387
          %s389 = sshll.u32 %s381, 4
          %s390 = int_to_ptr.vmem [resolvable:$true] %s389
          %392 = dma.hbm_to_vmem [thread:$0]  %s388, 64, %s390, %s378
        $region52: #{tpu_custom_call.1} parent=47 // pred_fallthru
          _
        // Predicated region
        $region53: #{tpu_custom_call.1} parent=47 // pred_check
          %p393 = pneg %p85
        $region54: #{tpu_custom_call.1} parent=47 // pred_check_branch
          %395 = sbr.rel (%p393) target = $region56
        $region55: #{tpu_custom_call.1} parent=47 // pred_region
          %s396 = sand.u32 %s27, 1
          %s397 = scalar_lea.sflag [#allocation8], %s396
          %s398 = sand.u32 %s75, 1
          %s399 = scalar_lea.vmem [#allocation7], %s398
          %401 = vsyncadd %s397, 0
          %s402 = scalar_lea.hbm %s1, %s34
          %s404 = sshll.u32 %s402, 4
          %s405 = int_to_ptr.hbm [resolvable:$true] %s404
          %s406 = sshll.u32 %s399, 4
          %s407 = int_to_ptr.vmem [resolvable:$true] %s406
          %409 = dma.hbm_to_vmem [thread:$0]  %s405, 16, %s407, %s397
        $region56: #{tpu_custom_call.1} parent=47 // pred_fallthru
          _
      $region48: #{tpu_custom_call.1} parent=5 // pred_fallthru
        _
      %p410 = scmp.le.s32.totalorder 1, %s27
      %p411 = scmp.lt.s32.totalorder %s27, 3
      %p412 = pnand %p410, %p411
      %p413 = pneg %p412
      // Predicated region
      $region57: #{tpu_custom_call.1} parent=5 // pred_check
        _
      $region58: #{tpu_custom_call.1} parent=5 // pred_check_branch
        %415 = sbr.rel (%p412) target = $region60
      $region59: #{tpu_custom_call.1} parent=5 // pred_region
        %s416 = ssub.s32 %s27, 1
        %s417 = sand.u32 %s52, 1
        %s418 = scalar_lea.sflag [#allocation5], %s417
        %s419 = sand.u32 %s52, 1
        %s420 = smul.addr %s419, 4
        %s421 = scalar_lea.vmem [#allocation4], %s420
        // Predicated region
        $region61: #{tpu_custom_call.1} parent=59 // pred_check
          %p422 = pneg %p65
        $region62: #{tpu_custom_call.1} parent=59 // pred_check_branch
          %424 = sbr.rel (%p422) target = $region64
        $region63: #{tpu_custom_call.1} parent=59 // pred_region
          %426 = dma.done %s418, 64
        $region64: #{tpu_custom_call.1} parent=59 // pred_fallthru
          _
        %s427 = sand.u32 %s32, 1
        %s428 = scalar_lea.sflag [#allocation8], %s427
        %s429 = sand.u32 %s78, 1
        %s430 = scalar_lea.vmem [#allocation7], %s429
        // Predicated region
        $region65: #{tpu_custom_call.1} parent=59 // pred_check
          %p431 = pneg %p91
        $region66: #{tpu_custom_call.1} parent=59 // pred_check_branch
          %433 = sbr.rel (%p431) target = $region68
        $region67: #{tpu_custom_call.1} parent=59 // pred_region
          %435 = dma.done %s428, 16
        $region68: #{tpu_custom_call.1} parent=59 // pred_fallthru
          _
        // Predicated region
        $region69: #{tpu_custom_call.1} parent=59 // pred_check
          %p436 = pneg %p112
        $region70: #{tpu_custom_call.1} parent=59 // pred_check_branch
          %438 = sbr.rel (%p436) target = $region72
        $region71: #{tpu_custom_call.1} parent=59 // pred_region
          %440 = dma.done [#allocation8], 256
        $region72: #{tpu_custom_call.1} parent=59 // pred_fallthru
          _
        // Predicated region
        $region73: #{tpu_custom_call.1} parent=59 // pred_check
          %p441 = pneg %p154
        $region74: #{tpu_custom_call.1} parent=59 // pred_check_branch
          %443 = sbr.rel (%p441) target = $region76
        $region75: #{tpu_custom_call.1} parent=59 // pred_region
          %445 = dma.done [#allocation11], 256
        $region76: #{tpu_custom_call.1} parent=59 // pred_fallthru
          _
        // Predicated region
        $region77: #{tpu_custom_call.1} parent=59 // pred_check
          %p446 = pneg %p196
        $region78: #{tpu_custom_call.1} parent=59 // pred_check_branch
          %448 = sbr.rel (%p446) target = $region80
        $region79: #{tpu_custom_call.1} parent=59 // pred_region
          %450 = dma.done [#allocation11], 256
        $region80: #{tpu_custom_call.1} parent=59 // pred_fallthru
          _
        // Predicated region
        $region81: #{tpu_custom_call.1} parent=59 // pred_check
          %p451 = pneg %p238
        $region82: #{tpu_custom_call.1} parent=59 // pred_check_branch
          %453 = sbr.rel (%p451) target = $region84
        $region83: #{tpu_custom_call.1} parent=59 // pred_region
          %455 = dma.done [#allocation14], 256
        $region84: #{tpu_custom_call.1} parent=59 // pred_fallthru
          _
        %s456 = sand.u32 %s52, 1
        %s457 = scalar_lea.sflag [#allocation5], %s456
        %s458 = sand.u32 %s52, 1
        %s459 = smul.addr %s458, 4
        %s460 = scalar_lea.vmem [#allocation4], %s459
        %p461 = pneg %p65
        %p462 = pneg %p62
        %s463 = sand.u32 %s32, 1
        %s464 = scalar_lea.sflag [#allocation8], %s463
        %s465 = sand.u32 %s78, 1
        %s466 = scalar_lea.vmem [#allocation7], %s465
        %p467 = pneg %p91
        %p468 = pneg %p88
        %p469 = pneg %p112
        %p470 = pneg %p109
        %p471 = pneg %p133
        %p472 = pneg %p130
        %p473 = pneg %p154
        %p474 = pneg %p151
        %p475 = pneg %p175
        %p476 = pneg %p172
        %p477 = pneg %p196
        %p478 = pneg %p193
        %p479 = pneg %p217
        %p480 = pneg %p214
        %p481 = pneg %p238
        %p482 = pneg %p235
        %p483 = pneg %p259
        %p484 = pneg %p256
        %p485 = pneg %p287
        %p486 = pneg %p284
        %s487 = sand.u32 %s274, 1
        %s488 = scalar_lea.sflag [#allocation6], %s487
        %s489 = sand.u32 %s274, 1
        %s490 = smul.addr %s489, 8
        %s491 = scalar_lea.vmem [#allocation15], %s490
        %p493 = scmp.eq.s32.totalorder %s37, 0
        // Predicated region
        $region85: #{tpu_custom_call.1} parent=59 // pred_check
          %p494 = pneg %p493
        $region86: #{tpu_custom_call.1} parent=59 // pred_check_branch
          %496 = sbr.rel (%p494) target = $region88
        $region87: #{tpu_custom_call.1} parent=59 // pred_region
          %v497 = vld [vmem:[%s421] sm:$0xf]
          %v498 = vld [vmem:[#allocation10] sm:$0xf]
          %v499 = vld [vmem:[#allocation10 + $0x4] sm:$0xf]
          %v500 = vld [vmem:[#allocation10 + $0x8] sm:$0xf]
          %v501 = vld [vmem:[#allocation10 + $0xc] sm:$0xf]
          %v502 = vld [vmem:[%s5] sm:$0x1]
          %v504 = vperm.slane %v502, 0
          %v510 = vunpack.c.l.b16 %v498
          %v511 = vunpack.c.l.b16 %v499
          %v512 = vunpack.c.l.b16 %v500
          %v513 = vunpack.c.l.b16 %v501
          %v514 = vpack.c.b16 %v511, %v510
          %v515 = vpack.c.b16 %v513, %v512
          %vm518 = vcmask 261120
          %v520 = vsel %vm518, %v497, 0
          %522 = vmatpush.bf16.msra.mxu0 0
          %523 = vmatpush.bf16.msra.mxu0 0
          %524 = vmatpush.bf16.msra.mxu0 0
          %525 = vmatpush.bf16.msra.mxu0 0
          %526 = vmatpush.bf16.msra.mxu0 0
          %527 = vmatpush.bf16.msra.mxu0 0
          %528 = vmatpush.bf16.msra.mxu0 %v515
          %529 = vmatpush.bf16.msra.mxu0 %v514
          %530 = vmatmul.bf16.gmra.mxu0 %v520
          %v531 = vpop.f32.mrf.mxu0
          %v532 = vadd.f32 %v504, %v531
          %v533 = vpop.f32.mrf.mxu0
          %534 = vdwg.mxu0
          %v535 = vld [vmem:[#allocation12] sm:$0xf]
          %v536 = vld [vmem:[#allocation12 + $0x4] sm:$0xf]
          %v537 = vld [vmem:[#allocation12 + $0x8] sm:$0xf]
          %v538 = vld [vmem:[#allocation12 + $0xc] sm:$0xf]
          %v539 = vld [vmem:[%s7] sm:$0x1]
          %v541 = vperm.slane %v539, 0
          %v547 = vunpack.c.l.b16 %v535
          %v548 = vunpack.c.l.b16 %v536
          %v549 = vunpack.c.l.b16 %v537
          %v550 = vunpack.c.l.b16 %v538
          %v551 = vpack.c.b16 %v548, %v547
          %v552 = vpack.c.b16 %v550, %v549
          %555 = vmatpush.bf16.msra.mxu0 0
          %556 = vmatpush.bf16.msra.mxu0 0
          %557 = vmatpush.bf16.msra.mxu0 0
          %558 = vmatpush.bf16.msra.mxu0 0
          %559 = vmatpush.bf16.msra.mxu0 0
          %560 = vmatpush.bf16.msra.mxu0 0
          %561 = vmatpush.bf16.msra.mxu0 %v552
          %562 = vmatpush.bf16.msra.mxu0 %v551
          %563 = vmatmul.bf16.gmra.mxu0 %v520
          %v564 = vpop.f32.mrf.mxu0
          %v565 = vadd.f32 %v541, %v564
          %v566 = vpop.f32.mrf.mxu0
          %567 = vdwg.mxu0
          %568 = vxpose.xlu0.b32.start [1/16] %v532, 128
          %569 = vxpose.xlu0.b32.cont [2/16] 0.0, 128
          %570 = vxpose.xlu0.b32.cont [3/16] 0.0, 128
          %571 = vxpose.xlu0.b32.cont [4/16] 0.0, 128
          %572 = vxpose.xlu0.b32.cont [5/16] 0.0, 128
          %573 = vxpose.xlu0.b32.cont [6/16] 0.0, 128
          %574 = vxpose.xlu0.b32.cont [7/16] 0.0, 128
          %575 = vxpose.xlu0.b32.cont [8/16] 0.0, 128
          %576 = vxpose.xlu0.b32.cont [9/16] 0.0, 128
          %577 = vxpose.xlu0.b32.cont [10/16] 0.0, 128
          %578 = vxpose.xlu0.b32.cont [11/16] 0.0, 128
          %579 = vxpose.xlu0.b32.cont [12/16] 0.0, 128
          %580 = vxpose.xlu0.b32.cont [13/16] 0.0, 128
          %581 = vxpose.xlu0.b32.cont [14/16] 0.0, 128
          %582 = vxpose.xlu0.b32.cont [15/16] 0.0, 128
          %583 = vxpose.xlu0.b32.end [16/16] 0.0, 128
          %v584 = vpop.trf.xlu0
          %v585 = vpop.trf.xlu0
          %v586 = vpop.trf.xlu0
          %v587 = vpop.trf.xlu0
          %v588 = vpop.trf.xlu0
          %v589 = vpop.trf.xlu0
          %v590 = vpop.trf.xlu0
          %v591 = vpop.trf.xlu0
          %v592 = vpop.trf.xlu0
          %v593 = vpop.trf.xlu0
          %v594 = vpop.trf.xlu0
          %v595 = vpop.trf.xlu0
          %v596 = vpop.trf.xlu0
          %v597 = vpop.trf.xlu0
          %v598 = vpop.trf.xlu0
          %v599 = vpop.trf.xlu0
          %v600 = vpack.c.bf16 %v584, %v584
          %v601 = vpack.c.bf16 %v585, %v585
          %v602 = vpack.c.bf16 %v586, %v586
          %v603 = vpack.c.bf16 %v587, %v587
          %vm604 = vcmask 60416
          %605 = vst.msk [vmem:[#allocation2] sm:$0xf] %vm604, %v600
          %606 = vst.msk [vmem:[#allocation2 + $0x4] sm:$0xf] %vm604, %v601
          %607 = vst.msk [vmem:[#allocation2 + $0x8] sm:$0xf] %vm604, %v602
          %608 = vst.msk [vmem:[#allocation2 + $0xc] sm:$0xf] %vm604, %v603
          %v609 = vpack.c.bf16 %v565, %v565
          %vm610 = vcmask 257024
          %611 = vst.msk [vmem:[#allocation3] sm:$0xf] %vm610, %v609
        $region88: #{tpu_custom_call.1} parent=59 // pred_fallthru
          _
        %s612 = smul.u32 %s37, 8
        %s613 = sshra.s32 %s612, 3
        %s614 = sand.u32 %s612, 7
        %s615 = smul.addr %s613, 4
        %s616 = scalar_lea.vmem %s421, %s615 [#allocation4]
        %v617 = vld [vmem:[%s616] sm:$0xf]
        %v618 = vld [vmem:[#allocation9] sm:$0xf]
        %v619 = vld [vmem:[#allocation9 + $0x4] sm:$0xf]
        %v620 = vld [vmem:[#allocation9 + $0x8] sm:$0xf]
        %v621 = vld [vmem:[#allocation9 + $0xc] sm:$0xf]
        %v622 = vld [vmem:[%s3] sm:$0x1]
        %v624 = vperm.slane %v622, 0
        %v630 = vunpack.c.l.b16 %v618
        %v631 = vunpack.c.l.b16 %v619
        %v632 = vunpack.c.l.b16 %v620
        %v633 = vunpack.c.l.b16 %v621
        %v634 = vpack.c.b16 %v631, %v630
        %v635 = vpack.c.b16 %v633, %v632
        %vm638 = vcmask 261120
        %v640 = vsel %vm638, %v617, 0
        %642 = vmatpush.bf16.msra.mxu0 0
        %643 = vmatpush.bf16.msra.mxu0 0
        %644 = vmatpush.bf16.msra.mxu0 0
        %645 = vmatpush.bf16.msra.mxu0 0
        %646 = vmatpush.bf16.msra.mxu0 0
        %647 = vmatpush.bf16.msra.mxu0 0
        %648 = vmatpush.bf16.msra.mxu0 %v635
        %649 = vmatpush.bf16.msra.mxu0 %v634
        %650 = vmatmul.bf16.gmra.mxu0 %v640
        %v651 = vpop.f32.mrf.mxu0
        %v652 = vadd.f32 %v624, %v651
        %v653 = vpop.f32.mrf.mxu0
        %654 = vdwg.mxu0
        %v655 = vld [vmem:[%s430] sm:$0x1]
        %vm656 = vcmp.eq.f32.partialorder %v655, 0.0
        %v657 = vsel %vm656, -1.7014117e+38, 0.0
        %v658 = vld [vmem:[%s9] sm:$0x1]
        %v660 = vperm.slane %v658, 0
        %v662 = vpack.c.bf16 %v652, %v652
        %v663 = vld [vmem:[#allocation2] sm:$0xf]
        %v664 = vld [vmem:[#allocation3] sm:$0xf]
        %v666 = vperm.slane %v657, 0
        %vm668 = vcmask 64512
        %v670 = vsel %vm668, %v662, 0
        %vm672 = vcmask 1043456
        %v674 = vsel %vm672, %v663, 0
        %676 = vmatpush.bf16.msra.mxu0 0
        %677 = vmatpush.bf16.msra.mxu0 0
        %678 = vmatpush.bf16.msra.mxu0 0
        %679 = vmatpush.bf16.msra.mxu0 0
        %680 = vmatpush.bf16.msra.mxu0 0
        %681 = vmatpush.bf16.msra.mxu0 0
        %682 = vmatpush.bf16.msra.mxu0 0
        %683 = vmatpush.bf16.msra.mxu0 %v674
        %684 = vmatmul.bf16.gmra.mxu0 %v670
        %v685 = vpop.f32.mrf.mxu0
        %v686 = vadd.f32 %v666, %v685
        %v687 = vpop.f32.mrf.mxu0
        %688 = vdwg.mxu0
        %v689 = vsel %vm668, %v686, -inf
        %690 = vmax.xlane.f32.xlu0 %v689
        %v691 = vpop.xlane.xlu0 %690
        %v692 = vsub.f32 %v686, %v691
        %v693 = vmul.f32 %v692, 1.442695
        %v694 = vpow.pop %v693
        %v695 = vsel %vm668, %v694, 0.0
        %696 = vadd.xlane.f32.xlu0 %v695
        %v697 = vpop.xlane.xlu0 %696
        %v698 = vrcp.pop %v697
        %v699 = vmul.f32 %v697, %v698
        %v700 = vsub.f32 1.0, %v699
        %v701 = vmul.f32 %v698, %v700
        %v702 = vadd.f32 %v698, %v701
        %vm703 = vweird.f32 %v697
        %vm704 = vweird.f32 %v698
        %vm705 = vmor %vm703, %vm704
        %v706 = vsel %vm705, %v698, %v702
        %v707 = vand.u32 2147483647, %v697
        %vm708 = vcmp.eq.f32.partialorder %v707, 8.507059e+37
        %v709 = vand.u32 %v697, 2147483648
        %v710 = vor.u32 1.1754944e-38, %v709
        %v711 = vsel %vm708, %v710, %v706
        %v712 = vmul.f32 %v694, %v711
        %v713 = vpack.c.bf16 %v712, %v712
        %v715 = vsel %vm668, %v713, 0
        %v718 = vsel %vm672, %v664, 0
        %720 = vmatpush.bf16.msra.mxu0 0
        %721 = vmatpush.bf16.msra.mxu0 0
        %722 = vmatpush.bf16.msra.mxu0 0
        %723 = vmatpush.bf16.msra.mxu0 0
        %724 = vmatpush.bf16.msra.mxu0 0
        %725 = vmatpush.bf16.msra.mxu0 0
        %726 = vmatpush.bf16.msra.mxu0 0
        %727 = vmatpush.bf16.msra.mxu0 %v718
        %728 = vmatmul.bf16.gmra.mxu0 %v715
        %v729 = vpop.f32.mrf.mxu0
        %v730 = vadd.f32 0.0, %v729
        %v731 = vpop.f32.mrf.mxu0
        %732 = vdwg.mxu0
        %v733 = vpack.c.bf16 %v730, %v730
        %v734 = vld [vmem:[#allocation13] sm:$0xf]
        %v736 = vsel %vm668, %v733, 0
        %v739 = vsel %vm672, %v734, 0
        %741 = vmatpush.bf16.msra.mxu0 0
        %742 = vmatpush.bf16.msra.mxu0 0
        %743 = vmatpush.bf16.msra.mxu0 0
        %744 = vmatpush.bf16.msra.mxu0 0
        %745 = vmatpush.bf16.msra.mxu0 0
        %746 = vmatpush.bf16.msra.mxu0 0
        %747 = vmatpush.bf16.msra.mxu0 0
        %748 = vmatpush.bf16.msra.mxu0 %v739
        %749 = vmatmul.bf16.gmra.mxu0 %v736
        %v750 = vpop.f32.mrf.mxu0
        %v751 = vadd.f32 0.0, %v750
        %v752 = vpop.f32.mrf.mxu0
        %753 = vdwg.mxu0
        %v754 = vadd.f32 %v660, %v751
        %v755 = vld [vmem:[#allocation2 + $0x4] sm:$0xf]
        %v756 = vld [vmem:[#allocation3] sm:$0xf]
        %v758 = vunpack.c.l.b16 %v662
        %v759 = vpack.c.b16 %v758, %v758
        %760 = vrot.lane.b32.xlu0 %v759, 120
        %v761 = vpop.permute.xlu0 %760
        %v763 = vsel %vm668, %v761, 0
        %v766 = vsel %vm672, %v755, 0
        %768 = vmatpush.bf16.msra.mxu0 0
        %769 = vmatpush.bf16.msra.mxu0 0
        %770 = vmatpush.bf16.msra.mxu0 0
        %771 = vmatpush.bf16.msra.mxu0 0
        %772 = vmatpush.bf16.msra.mxu0 0
        %773 = vmatpush.bf16.msra.mxu0 0
        %774 = vmatpush.bf16.msra.mxu0 0
        %775 = vmatpush.bf16.msra.mxu0 %v766
        %776 = vmatmul.bf16.gmra.mxu0 %v763
        %v777 = vpop.f32.mrf.mxu0
        %v778 = vadd.f32 %v666, %v777
        %v779 = vpop.f32.mrf.mxu0
        %780 = vdwg.mxu0
        %v781 = vsel %vm668, %v778, -inf
        %782 = vmax.xlane.f32.xlu0 %v781
        %v783 = vpop.xlane.xlu0 %782
        %v784 = vsub.f32 %v778, %v783
        %v785 = vmul.f32 %v784, 1.442695
        %v786 = vpow.pop %v785
        %v787 = vsel %vm668, %v786, 0.0
        %788 = vadd.xlane.f32.xlu0 %v787
        %v789 = vpop.xlane.xlu0 %788
        %v790 = vrcp.pop %v789
        %v791 = vmul.f32 %v789, %v790
        %v792 = vsub.f32 1.0, %v791
        %v793 = vmul.f32 %v790, %v792
        %v794 = vadd.f32 %v790, %v793
        %vm795 = vweird.f32 %v789
        %vm796 = vweird.f32 %v790
        %vm797 = vmor %vm795, %vm796
        %v798 = vsel %vm797, %v790, %v794
        %v799 = vand.u32 2147483647, %v789
        %vm800 = vcmp.eq.f32.partialorder %v799, 8.507059e+37
        %v801 = vand.u32 %v789, 2147483648
        %v802 = vor.u32 1.1754944e-38, %v801
        %v803 = vsel %vm800, %v802, %v798
        %v804 = vmul.f32 %v786, %v803
        %v805 = vpack.c.bf16 %v804, %v804
        %v807 = vunpack.c.l.b16 %v756
        %v808 = vpack.c.b16 %v807, %v807
        %809 = vrot.lane.b32.xlu0 %v808, 120
        %v810 = vpop.permute.xlu0 %809
        %v812 = vsel %vm668, %v805, 0
        %v815 = vsel %vm672, %v810, 0
        %817 = vmatpush.bf16.msra.mxu0 0
        %818 = vmatpush.bf16.msra.mxu0 0
        %819 = vmatpush.bf16.msra.mxu0 0
        %820 = vmatpush.bf16.msra.mxu0 0
        %821 = vmatpush.bf16.msra.mxu0 0
        %822 = vmatpush.bf16.msra.mxu0 0
        %823 = vmatpush.bf16.msra.mxu0 0
        %824 = vmatpush.bf16.msra.mxu0 %v815
        %825 = vmatmul.bf16.gmra.mxu0 %v812
        %v826 = vpop.f32.mrf.mxu0
        %v827 = vadd.f32 0.0, %v826
        %v828 = vpop.f32.mrf.mxu0
        %829 = vdwg.mxu0
        %v830 = vpack.c.bf16 %v827, %v827
        %v831 = vld [vmem:[#allocation13 + $0x4] sm:$0xf]
        %v833 = vsel %vm668, %v830, 0
        %v836 = vsel %vm672, %v831, 0
        %838 = vmatpush.bf16.msra.mxu0 0
        %839 = vmatpush.bf16.msra.mxu0 0
        %840 = vmatpush.bf16.msra.mxu0 0
        %841 = vmatpush.bf16.msra.mxu0 0
        %842 = vmatpush.bf16.msra.mxu0 0
        %843 = vmatpush.bf16.msra.mxu0 0
        %844 = vmatpush.bf16.msra.mxu0 0
        %845 = vmatpush.bf16.msra.mxu0 %v836
        %846 = vmatmul.bf16.gmra.mxu0 %v833
        %v847 = vpop.f32.mrf.mxu0
        %v848 = vadd.f32 0.0, %v847
        %v849 = vpop.f32.mrf.mxu0
        %850 = vdwg.mxu0
        %v851 = vadd.f32 %v754, %v848
        %v852 = vld [vmem:[#allocation2 + $0x8] sm:$0xf]
        %v853 = vld [vmem:[#allocation3] sm:$0xf]
        %854 = vrot.lane.b32.xlu0 %v759, 112
        %v855 = vpop.permute.xlu0 %854
        %v857 = vsel %vm668, %v855, 0
        %v860 = vsel %vm672, %v852, 0
        %862 = vmatpush.bf16.msra.mxu0 0
        %863 = vmatpush.bf16.msra.mxu0 0
        %864 = vmatpush.bf16.msra.mxu0 0
        %865 = vmatpush.bf16.msra.mxu0 0
        %866 = vmatpush.bf16.msra.mxu0 0
        %867 = vmatpush.bf16.msra.mxu0 0
        %868 = vmatpush.bf16.msra.mxu0 0
        %869 = vmatpush.bf16.msra.mxu0 %v860
        %870 = vmatmul.bf16.gmra.mxu0 %v857
        %v871 = vpop.f32.mrf.mxu0
        %v872 = vadd.f32 %v666, %v871
        %v873 = vpop.f32.mrf.mxu0
        %874 = vdwg.mxu0
        %v875 = vsel %vm668, %v872, -inf
        %876 = vmax.xlane.f32.xlu0 %v875
        %v877 = vpop.xlane.xlu0 %876
        %v878 = vsub.f32 %v872, %v877
        %v879 = vmul.f32 %v878, 1.442695
        %v880 = vpow.pop %v879
        %v881 = vsel %vm668, %v880, 0.0
        %882 = vadd.xlane.f32.xlu0 %v881
        %v883 = vpop.xlane.xlu0 %882
        %v884 = vrcp.pop %v883
        %v885 = vmul.f32 %v883, %v884
        %v886 = vsub.f32 1.0, %v885
        %v887 = vmul.f32 %v884, %v886
        %v888 = vadd.f32 %v884, %v887
        %vm889 = vweird.f32 %v883
        %vm890 = vweird.f32 %v884
        %vm891 = vmor %vm889, %vm890
        %v892 = vsel %vm891, %v884, %v888
        %v893 = vand.u32 2147483647, %v883
        %vm894 = vcmp.eq.f32.partialorder %v893, 8.507059e+37
        %v895 = vand.u32 %v883, 2147483648
        %v896 = vor.u32 1.1754944e-38, %v895
        %v897 = vsel %vm894, %v896, %v892
        %v898 = vmul.f32 %v880, %v897
        %v899 = vpack.c.bf16 %v898, %v898
        %v901 = vunpack.c.l.b16 %v853
        %v902 = vpack.c.b16 %v901, %v901
        %903 = vrot.lane.b32.xlu0 %v902, 112
        %v904 = vpop.permute.xlu0 %903
        %v906 = vsel %vm668, %v899, 0
        %v909 = vsel %vm672, %v904, 0
        %911 = vmatpush.bf16.msra.mxu0 0
        %912 = vmatpush.bf16.msra.mxu0 0
        %913 = vmatpush.bf16.msra.mxu0 0
        %914 = vmatpush.bf16.msra.mxu0 0
        %915 = vmatpush.bf16.msra.mxu0 0
        %916 = vmatpush.bf16.msra.mxu0 0
        %917 = vmatpush.bf16.msra.mxu0 0
        %918 = vmatpush.bf16.msra.mxu0 %v909
        %919 = vmatmul.bf16.gmra.mxu0 %v906
        %v920 = vpop.f32.mrf.mxu0
        %v921 = vadd.f32 0.0, %v920
        %v922 = vpop.f32.mrf.mxu0
        %923 = vdwg.mxu0
        %v924 = vpack.c.bf16 %v921, %v921
        %v925 = vld [vmem:[#allocation13 + $0x8] sm:$0xf]
        %v927 = vsel %vm668, %v924, 0
        %v930 = vsel %vm672, %v925, 0
        %932 = vmatpush.bf16.msra.mxu0 0
        %933 = vmatpush.bf16.msra.mxu0 0
        %934 = vmatpush.bf16.msra.mxu0 0
        %935 = vmatpush.bf16.msra.mxu0 0
        %936 = vmatpush.bf16.msra.mxu0 0
        %937 = vmatpush.bf16.msra.mxu0 0
        %938 = vmatpush.bf16.msra.mxu0 0
        %939 = vmatpush.bf16.msra.mxu0 %v930
        %940 = vmatmul.bf16.gmra.mxu0 %v927
        %v941 = vpop.f32.mrf.mxu0
        %v942 = vadd.f32 0.0, %v941
        %v943 = vpop.f32.mrf.mxu0
        %944 = vdwg.mxu0
        %v945 = vadd.f32 %v851, %v942
        %v946 = vld [vmem:[#allocation2 + $0xc] sm:$0xf]
        %v947 = vld [vmem:[#allocation3] sm:$0xf]
        %948 = vrot.lane.b32.xlu0 %v759, 104
        %v949 = vpop.permute.xlu0 %948
        %v951 = vsel %vm668, %v949, 0
        %v954 = vsel %vm672, %v946, 0
        %956 = vmatpush.bf16.msra.mxu0 0
        %957 = vmatpush.bf16.msra.mxu0 0
        %958 = vmatpush.bf16.msra.mxu0 0
        %959 = vmatpush.bf16.msra.mxu0 0
        %960 = vmatpush.bf16.msra.mxu0 0
        %961 = vmatpush.bf16.msra.mxu0 0
        %962 = vmatpush.bf16.msra.mxu0 0
        %963 = vmatpush.bf16.msra.mxu0 %v954
        %964 = vmatmul.bf16.gmra.mxu0 %v951
        %v965 = vpop.f32.mrf.mxu0
        %v966 = vadd.f32 %v666, %v965
        %v967 = vpop.f32.mrf.mxu0
        %968 = vdwg.mxu0
        %v969 = vsel %vm668, %v966, -inf
        %970 = vmax.xlane.f32.xlu0 %v969
        %v971 = vpop.xlane.xlu0 %970
        %v972 = vsub.f32 %v966, %v971
        %v973 = vmul.f32 %v972, 1.442695
        %v974 = vpow.pop %v973
        %v975 = vsel %vm668, %v974, 0.0
        %976 = vadd.xlane.f32.xlu0 %v975
        %v977 = vpop.xlane.xlu0 %976
        %v978 = vrcp.pop %v977
        %v979 = vmul.f32 %v977, %v978
        %v980 = vsub.f32 1.0, %v979
        %v981 = vmul.f32 %v978, %v980
        %v982 = vadd.f32 %v978, %v981
        %vm983 = vweird.f32 %v977
        %vm984 = vweird.f32 %v978
        %vm985 = vmor %vm983, %vm984
        %v986 = vsel %vm985, %v978, %v982
        %v987 = vand.u32 2147483647, %v977
        %vm988 = vcmp.eq.f32.partialorder %v987, 8.507059e+37
        %v989 = vand.u32 %v977, 2147483648
        %v990 = vor.u32 1.1754944e-38, %v989
        %v991 = vsel %vm988, %v990, %v986
        %v992 = vmul.f32 %v974, %v991
        %v993 = vpack.c.bf16 %v992, %v992
        %v995 = vunpack.c.l.b16 %v947
        %v996 = vpack.c.b16 %v995, %v995
        %997 = vrot.lane.b32.xlu0 %v996, 104
        %v998 = vpop.permute.xlu0 %997
        %v1000 = vsel %vm668, %v993, 0
        %v1003 = vsel %vm672, %v998, 0
        %1005 = vmatpush.bf16.msra.mxu0 0
        %1006 = vmatpush.bf16.msra.mxu0 0
        %1007 = vmatpush.bf16.msra.mxu0 0
        %1008 = vmatpush.bf16.msra.mxu0 0
        %1009 = vmatpush.bf16.msra.mxu0 0
        %1010 = vmatpush.bf16.msra.mxu0 0
        %1011 = vmatpush.bf16.msra.mxu0 0
        %1012 = vmatpush.bf16.msra.mxu0 %v1003
        %1013 = vmatmul.bf16.gmra.mxu0 %v1000
        %v1014 = vpop.f32.mrf.mxu0
        %v1015 = vadd.f32 0.0, %v1014
        %v1016 = vpop.f32.mrf.mxu0
        %1017 = vdwg.mxu0
        %v1018 = vpack.c.bf16 %v1015, %v1015
        %v1019 = vld [vmem:[#allocation13 + $0xc] sm:$0xf]
        %v1021 = vsel %vm668, %v1018, 0
        %v1024 = vsel %vm672, %v1019, 0
        %1026 = vmatpush.bf16.msra.mxu0 0
        %1027 = vmatpush.bf16.msra.mxu0 0
        %1028 = vmatpush.bf16.msra.mxu0 0
        %1029 = vmatpush.bf16.msra.mxu0 0
        %1030 = vmatpush.bf16.msra.mxu0 0
        %1031 = vmatpush.bf16.msra.mxu0 0
        %1032 = vmatpush.bf16.msra.mxu0 0
        %1033 = vmatpush.bf16.msra.mxu0 %v1024
        %1034 = vmatmul.bf16.gmra.mxu0 %v1021
        %v1035 = vpop.f32.mrf.mxu0
        %v1036 = vadd.f32 0.0, %v1035
        %v1037 = vpop.f32.mrf.mxu0
        %1038 = vdwg.mxu0
        %v1039 = vadd.f32 %v945, %v1036
        %1040 = vst.msk [vmem:[%s491] sm:$0xff] %vm638, %v1039
        %s1041 = sand.u32 %s274, 1
        %s1042 = scalar_lea.sflag [#allocation6], %s1041
        %s1043 = sand.u32 %s274, 1
        %s1044 = smul.addr %s1043, 8
        %s1045 = scalar_lea.vmem [#allocation15], %s1044
        // Predicated region
        $region89: #{tpu_custom_call.1} parent=59 // pred_check
          %p1046 = pneg %p284
        $region90: #{tpu_custom_call.1} parent=59 // pred_check_branch
          %1048 = sbr.rel (%p1046) target = $region92
        $region91: #{tpu_custom_call.1} parent=59 // pred_region
          %1050 = vsyncadd %s1042, 0
          %s1051 = sadd.s32 %s37, %s36
          %s1052 = smul.addr %s1051, 8
          %s1053 = scalar_lea.hbm %s10, %s1052
          %s1055 = sshll.u32 %s1045, 4
          %s1056 = int_to_ptr.vmem [resolvable:$true] %s1055
          %s1057 = sshll.u32 %s1053, 4
          %s1058 = int_to_ptr.hbm [resolvable:$true] %s1057
          %1060 = dma.vmem_to_hbm [thread:$0]  %s1056, 128, %s1058, %s1042
        $region92: #{tpu_custom_call.1} parent=59 // pred_fallthru
          _
      $region60: #{tpu_custom_call.1} parent=5 // pred_fallthru
        _
      %p1061 = scmp.le.s32.totalorder 2, %s27
      // Predicated region
      $region93: #{tpu_custom_call.1} parent=5 // pred_check
        %p1062 = pneg %p1061
      $region94: #{tpu_custom_call.1} parent=5 // pred_check_branch
        %1064 = sbr.rel (%p1062) target = $region96
      $region95: #{tpu_custom_call.1} parent=5 // pred_region
        %s1065 = ssub.s32 %s27, 2
        // Predicated region
        $region97: #{tpu_custom_call.1} parent=95 // pred_check
          %p1066 = pneg %p290
        $region98: #{tpu_custom_call.1} parent=95 // pred_check_branch
          %1068 = sbr.rel (%p1066) target = $region100
        $region99: #{tpu_custom_call.1} parent=95 // pred_region
          %s1069 = sand.u32 %s275, 1
          %s1070 = scalar_lea.sflag [#allocation6], %s1069
          %s1071 = sand.u32 %s275, 1
          %s1072 = smul.addr %s1071, 8
          %s1073 = scalar_lea.vmem [#allocation15], %s1072
          %1075 = dma.done %s1070, 128
        $region100: #{tpu_custom_call.1} parent=95 // pred_fallthru
          _
      $region96: #{tpu_custom_call.1} parent=5 // pred_fallthru
        _
    $region6: #{tpu_custom_call.1} parent=1 // loop_footer
      %s31 = sadd.s32 1, %s27
    $region7: #{tpu_custom_call.1} parent=1 // loop_footer_branch
      %26 = sbr.rel target = $region3
    $region8: #{tpu_custom_call.1} parent=1 // loop_exit
      _
    %1076 = vsyncpa [#allocation5], 1
    %s1077 = scalar_lea.sflag [#allocation5], 1
    %1078 = vsyncpa %s1077, 1
    %1079 = vsyncpa [#allocation8], 1
    %s1080 = scalar_lea.sflag [#allocation8], 1
    %1081 = vsyncpa %s1080, 1
    %1082 = vsyncpa [#allocation11], 1
    %1083 = vsyncpa [#allocation14], 1
    %1084 = vsyncpa [#allocation6], 1
    %s1085 = scalar_lea.sflag [#allocation6], 1
    %1086 = vsyncpa %s1085, 1

</llo_original>
